<compile_context>
chip_gen: v7x
topology: tpu7x:2x2x1
jax: 0.10.0
libtpu: 0.0.40
codegen_flags: <defaults>
</compile_context>

<pallas_src>
import functools
import math

import jax
import jax.numpy as jnp
import numpy as np
from jax.experimental import pallas as pl
from jax.experimental.pallas import tpu as pltpu


def _encoder_layer_kernel(*refs, nhead, eps, bblk, seq, d_model, has_bias):
    if has_bias:
        qk_ref, src_ref, bias_ref = refs[0], refs[1], refs[2]
        rest = refs[3:]
    else:
        qk_ref, src_ref = refs[0], refs[1]
        bias_ref = None
        rest = refs[2:]
    (wqk_ref, bqk_ref, wv_ref, bv_ref, wo_ref, bo_ref,
     g1_ref, be1_ref, w1_ref, b1_ref, w2_ref, b2_ref,
     g2_ref, be2_ref, out_ref) = rest

    S, D = seq, d_model
    hd = D // nhead
    R = bblk * S
    cdt = jnp.bfloat16                       # MXU operand dtype (f32 accumulate)

    qk = qk_ref[...].reshape(R, D)           # (R, D) f32 ; q/k input = src + pos
    src = src_ref[...].reshape(R, D)         # (R, D) f32 ; value + residual input

    # ---- fused Q|K projection + V projection (MXU, bf16 -> f32 acc) ----
    qkp = jnp.dot(qk.astype(cdt), wqk_ref[...],
                  preferred_element_type=jnp.float32) + bqk_ref[...]      # (R, 2D)
    v = jnp.dot(src.astype(cdt), wv_ref[...],
                preferred_element_type=jnp.float32) + bv_ref[...]         # (R, D)

    # 1/sqrt(hd) already folded into Wq/bq by the wrapper.
    q3 = qkp[:, :D].reshape(bblk, S, D)
    k3 = qkp[:, D:].reshape(bblk, S, D)
    v3 = v.reshape(bblk, S, D)

    # ---- batched multi-head attention ----
    # Heads gathered on a leading (head-major) batch axis: (nhead*bblk, S, hd).
    def split_heads(x3):
        return jnp.concatenate(
            [x3[:, :, h * hd:(h + 1) * hd] for h in range(nhead)], axis=0)

    qh, kh, vh = split_heads(q3), split_heads(k3), split_heads(v3)

    s = jnp.einsum('gqd,gkd->gqk', qh.astype(cdt), kh.astype(cdt),
                   preferred_element_type=jnp.float32)                    # (G, S, S)
    if has_bias:
        s = s + jnp.tile(bias_ref[...], (nhead, 1, 1))
    s = s - jnp.max(s, axis=-1, keepdims=True)
    p = jnp.exp(s)
    p = p * pl.reciprocal(jnp.sum(p, axis=-1, keepdims=True), approx=True)
    o = jnp.einsum('gqk,gkd->gqd', p.astype(cdt), vh.astype(cdt),
                   preferred_element_type=jnp.float32)                    # (G, S, hd)

    # Merge heads back onto lanes -> (R, D), then one full-width output proj.
    attn = jnp.concatenate(
        [o[h * bblk:(h + 1) * bblk] for h in range(nhead)], axis=-1)      # (bblk,S,D)
    attn = attn.reshape(R, D)
    attn = jnp.dot(attn.astype(cdt), wo_ref[...],
                   preferred_element_type=jnp.float32) + bo_ref[...]

    # ---- residual + LayerNorm1 (f32) ----
    x = src + attn
    mu = jnp.mean(x, axis=-1, keepdims=True)
    var = jnp.mean((x - mu) ** 2, axis=-1, keepdims=True)
    xn = (x - mu) * jax.lax.rsqrt(var + eps) * g1_ref[...] + be1_ref[...]

    # ---- feed-forward (relu) ----
    h1 = jnp.dot(xn.astype(cdt), w1_ref[...],
                 preferred_element_type=jnp.float32) + b1_ref[...]
    h1 = jnp.maximum(h1, 0.0)
    h2 = jnp.dot(h1.astype(cdt), w2_ref[...],
                 preferred_element_type=jnp.float32) + b2_ref[...]

    # ---- residual + LayerNorm2 (f32) ----
    y = xn + h2
    mu2 = jnp.mean(y, axis=-1, keepdims=True)
    var2 = jnp.mean((y - mu2) ** 2, axis=-1, keepdims=True)
    y = (y - mu2) * jax.lax.rsqrt(var2 + eps) * g2_ref[...] + be2_ref[...]

    # TODO(synk): for D < 128 a lane-dense (bblk, S*D) output slab would avoid
    # masked stores; kept (bblk, S, D) so the final store reshape stays
    # layout-trivial (real MT3 D=512 is already lane-dense).
    out_ref[...] = y.reshape(bblk, S, D)


def _pick_block_b(B, S):
    """Batch elements folded per grid step (grows the matmul M dimension)."""
    best = 1
    for cand in range(1, B + 1):
        if B % cand:
            continue
        if cand > 1 and S % 8:
            continue                 # keep the in-kernel (bblk*S, D) fold sublane-aligned
        if cand * S > 256:
            continue                 # enough rows already to fill the MXU M dim
        if B >= 2 and B // cand < 2:
            continue                 # keep >=2 grid steps for v7x megacore sharding
        best = cand
    return best


def transformer_encoder_layer(src_sbd, pos_sbd, params, *, nhead,
                              attn_bias=None, eps=1e-5, block_b=None):
    """src_sbd / pos_sbd: (S, B, D) like the PyTorch module.  Returns (S, B, D).

    `params` use (in, out) weight layout.  `attn_bias`, if given, is an additive
    (B, S, S) f32 bias standing in for src_mask / key_padding_mask; when None no
    bias tensor is materialized or DMA'd.
    """
    S, B, D = src_sbd.shape
    F = params["w1"].shape[1]
    hd = D // nhead
    scale = 1.0 / math.sqrt(hd)

    src = jnp.transpose(src_sbd, (1, 0, 2)).astype(jnp.float32)            # (B,S,D)
    if pos_sbd is None:
        qk = src
    else:
        qk = jnp.transpose(src_sbd + pos_sbd, (1, 0, 2)).astype(jnp.float32)

    has_bias = attn_bias is not None
    bblk = _pick_block_b(B, S) if block_b is None else block_b
    assert B % bblk == 0
    grid = (B // bblk,)

    wdt, f32 = jnp.bfloat16, jnp.float32
    # Fold the attention scale into the Q projection; fuse Q|K weights.
    wqk = jnp.concatenate([params["wq"] * scale, params["wk"]], axis=1).astype(wdt)
    bqk = jnp.concatenate([params["bq"] * scale, params["bk"]], axis=1).astype(f32)
    wv, bv = params["wv"].astype(wdt), params["bv"].astype(f32)
    wo, bo = params["wo"].astype(wdt), params["bo"].astype(f32)
    w1, b1 = params["w1"].astype(wdt), params["b1"].astype(f32)
    w2, b2 = params["w2"].astype(wdt), params["b2"].astype(f32)
    g1, be1 = params["g1"].astype(f32), params["be1"].astype(f32)
    g2, be2 = params["g2"].astype(f32), params["be2"].astype(f32)

    kernel = functools.partial(_encoder_layer_kernel, nhead=nhead, eps=eps,
                               bblk=bblk, seq=S, d_model=D, has_bias=has_bias)

    def full_spec(shape):
        rank = len(shape)
        # TODO(synk): pipeline_mode=pl.Buffered(1) would avoid double-buffering
        # these grid-constant weight blocks (matters for v7x's 64 MiB VMEM).
        return pl.BlockSpec(shape, lambda b, _r=rank: (0,) * _r)

    per_batch = lambda sh: pl.BlockSpec(sh, lambda b: (b, 0, 0))

    in_specs = [per_batch((bblk, S, D)), per_batch((bblk, S, D))]
    operands = [qk, src]
    if has_bias:
        in_specs.append(per_batch((bblk, S, S)))
        operands.append(attn_bias.astype(f32))
    in_specs += [
        full_spec((D, 2 * D)), full_spec((1, 2 * D)),   # fused Wq|Wk, bq|bk
        full_spec((D, D)), full_spec((1, D)),           # Wv, bv
        full_spec((D, D)), full_spec((1, D)),           # Wo, bo
        full_spec((1, D)), full_spec((1, D)),           # norm1 gamma, beta
        full_spec((D, F)), full_spec((1, F)),           # linear1
        full_spec((F, D)), full_spec((1, D)),           # linear2
        full_spec((1, D)), full_spec((1, D)),           # norm2 gamma, beta
    ]
    operands += [wqk, bqk, wv, bv, wo, bo, g1, be1, w1, b1, w2, b2, g2, be2]

    out = pl.pallas_call(
        kernel,
        out_shape=jax.ShapeDtypeStruct((B, S, D), jnp.float32),
        grid_spec=pltpu.PrefetchScalarGridSpec(
            num_scalar_prefetch=0,
            grid=grid,
            in_specs=in_specs,
            out_specs=pl.BlockSpec((bblk, S, D), lambda b: (b, 0, 0)),
        ),
        compiler_params=pltpu.CompilerParams(
            dimension_semantics=("parallel",),
            vmem_limit_bytes=32 * 1024 * 1024),
        # TODO(synk): for MT3-scale S (hundreds+), tile attention over KV blocks
        # with an online softmax instead of the full (S, S) score matrix.
    )(*operands)

    return jnp.transpose(out, (1, 0, 2))                                   # (S,B,D)


def _reference(src_sbd, pos_sbd, params, *, nhead, eps=1e-5, mm_dtype=jnp.bfloat16):
    """Pure-JAX reference mirroring the PyTorch forward (eval mode).

    Matmul operands are cast to `mm_dtype` with f32 accumulation to mirror the
    kernel's MXU precision policy (pass jnp.float32 for a full-precision ref)."""
    src = jnp.transpose(src_sbd, (1, 0, 2))
    qk = src if pos_sbd is None else jnp.transpose(src_sbd + pos_sbd, (1, 0, 2))
    B, S, D = src.shape
    hd = D // nhead
    scale = hd ** -0.5

    def mm(a, b):
        return jnp.dot(a.astype(mm_dtype), b.astype(mm_dtype),
                       preferred_element_type=jnp.float32)

    q = mm(qk, params["wq"] * scale) + params["bq"] * scale
    k = mm(qk, params["wk"]) + params["bk"]
    v = mm(src, params["wv"]) + params["bv"]

    def split(x):
        return x.reshape(B, S, nhead, hd).transpose(0, 2, 1, 3)

    qh, kh, vh = split(q), split(k), split(v)
    s = jnp.einsum('bhqd,bhkd->bhqk', qh.astype(mm_dtype), kh.astype(mm_dtype),
                   preferred_element_type=jnp.float32)
    p = jax.nn.softmax(s, axis=-1)
    o = jnp.einsum('bhqk,bhkd->bhqd', p.astype(mm_dtype), vh.astype(mm_dtype),
                   preferred_element_type=jnp.float32)
    o = o.transpose(0, 2, 1, 3).reshape(B, S, D)
    o = mm(o, params["wo"]) + params["bo"]

    def ln(x, g, b):
        mu = x.mean(-1, keepdims=True)
        var = ((x - mu) ** 2).mean(-1, keepdims=True)
        return (x - mu) * jax.lax.rsqrt(var + eps) * g + b

    x = ln(src + o, params["g1"], params["be1"])
    h = jnp.maximum(mm(x, params["w1"]) + params["b1"], 0.0)
    h = mm(h, params["w2"]) + params["b2"]
    y = ln(x + h, params["g2"], params["be2"])
    return jnp.transpose(y, (1, 0, 2))


if __name__ == "__main__":
    # Small shapes consistent with the module: seq=8, batch=2, d_model=32,
    # nhead=4, dim_feedforward=64.
    S, B, D, H, F = 8, 2, 32, 4, 64

    key = jax.random.PRNGKey(0)
    ks = jax.random.split(key, 20)

    def rnd(k, shape, scale=0.1):
        return (scale * jax.random.normal(k, shape)).astype(jnp.float32)

    params = {
        "wq": rnd(ks[0], (D, D)), "bq": rnd(ks[1], (1, D)),
        "wk": rnd(ks[2], (D, D)), "bk": rnd(ks[3], (1, D)),
        "wv": rnd(ks[4], (D, D)), "bv": rnd(ks[5], (1, D)),
        "wo": rnd(ks[6], (D, D)), "bo": rnd(ks[7], (1, D)),
        "g1": jnp.ones((1, D), jnp.float32), "be1": jnp.zeros((1, D), jnp.float32),
        "w1": rnd(ks[8], (D, F)), "b1": rnd(ks[9], (1, F)),
        "w2": rnd(ks[10], (F, D)), "b2": rnd(ks[11], (1, D)),
        "g2": jnp.ones((1, D), jnp.float32), "be2": jnp.zeros((1, D), jnp.float32),
    }

    src = rnd(ks[12], (S, B, D), scale=1.0)     # (seq, batch, d_model) like PyTorch
    pos = rnd(ks[13], (S, B, D), scale=1.0)

    # TODO(synk): false_detect_embedding branch (key/value concatenation) not
    # implemented; module default is None.  Dropout layers are identity in eval.
    out = transformer_encoder_layer(src, pos, params, nhead=H)
    out = jax.block_until_ready(out)

    ref = _reference(src, pos, params, nhead=H)
    np.testing.assert_allclose(np.asarray(out), np.asarray(ref),
                               rtol=1e-2, atol=1e-2)

    print("KERNEL_OK")
</pallas_src>

<mosaic_0001>
module attributes {stable_mosaic.version = 11 : i64} {
  func.func @_encoder_layer_kernel(%arg0: i32, %arg1: memref<1x8x32xf32, #tpu.memory_space<vmem>>, %arg2: memref<1x8x32xf32, #tpu.memory_space<vmem>>, %arg3: memref<32x64xbf16, #tpu.memory_space<vmem>>, %arg4: memref<1x64xf32, #tpu.memory_space<vmem>>, %arg5: memref<32x32xbf16, #tpu.memory_space<vmem>>, %arg6: memref<1x32xf32, #tpu.memory_space<vmem>>, %arg7: memref<32x32xbf16, #tpu.memory_space<vmem>>, %arg8: memref<1x32xf32, #tpu.memory_space<vmem>>, %arg9: memref<1x32xf32, #tpu.memory_space<vmem>>, %arg10: memref<1x32xf32, #tpu.memory_space<vmem>>, %arg11: memref<32x64xbf16, #tpu.memory_space<vmem>>, %arg12: memref<1x64xf32, #tpu.memory_space<vmem>>, %arg13: memref<64x32xbf16, #tpu.memory_space<vmem>>, %arg14: memref<1x32xf32, #tpu.memory_space<vmem>>, %arg15: memref<1x32xf32, #tpu.memory_space<vmem>>, %arg16: memref<1x32xf32, #tpu.memory_space<vmem>>, %arg17: memref<1x8x32xf32, #tpu.memory_space<vmem>>) attributes {dimension_semantics = [#tpu.dimension_semantics<parallel>], iteration_bounds = array<i64: 2>, scalar_prefetch = 0 : i64, scratch_operands = 0 : i64, tpu.core_type = #tpu.core_type<tc>, window_params = [{transform_indices = @transform_0, window_bounds = array<i64: 1, 8, 32>}, {transform_indices = @transform_1, window_bounds = array<i64: 1, 8, 32>}, {pipeline_mode = #tpu.pipeline_mode<synchronous>, transform_indices = @transform_2, window_bounds = array<i64: 32, 64>}, {pipeline_mode = #tpu.pipeline_mode<synchronous>, transform_indices = @transform_3, window_bounds = array<i64: 1, 64>}, {pipeline_mode = #tpu.pipeline_mode<synchronous>, transform_indices = @transform_4, window_bounds = array<i64: 32, 32>}, {pipeline_mode = #tpu.pipeline_mode<synchronous>, transform_indices = @transform_5, window_bounds = array<i64: 1, 32>}, {pipeline_mode = #tpu.pipeline_mode<synchronous>, transform_indices = @transform_6, window_bounds = array<i64: 32, 32>}, {pipeline_mode = #tpu.pipeline_mode<synchronous>, transform_indices = @transform_7, window_bounds = array<i64: 1, 32>}, {pipeline_mode = #tpu.pipeline_mode<synchronous>, transform_indices = @transform_8, window_bounds = array<i64: 1, 32>}, {pipeline_mode = #tpu.pipeline_mode<synchronous>, transform_indices = @transform_9, window_bounds = array<i64: 1, 32>}, {pipeline_mode = #tpu.pipeline_mode<synchronous>, transform_indices = @transform_10, window_bounds = array<i64: 32, 64>}, {pipeline_mode = #tpu.pipeline_mode<synchronous>, transform_indices = @transform_11, window_bounds = array<i64: 1, 64>}, {pipeline_mode = #tpu.pipeline_mode<synchronous>, transform_indices = @transform_12, window_bounds = array<i64: 64, 32>}, {pipeline_mode = #tpu.pipeline_mode<synchronous>, transform_indices = @transform_13, window_bounds = array<i64: 1, 32>}, {pipeline_mode = #tpu.pipeline_mode<synchronous>, transform_indices = @transform_14, window_bounds = array<i64: 1, 32>}, {pipeline_mode = #tpu.pipeline_mode<synchronous>, transform_indices = @transform_15, window_bounds = array<i64: 1, 32>}, {transform_indices = @transform_16, window_bounds = array<i64: 1, 8, 32>}]} {
    %c0 = arith.constant 0 : index
    %c0_0 = arith.constant 0 : index
    %c0_1 = arith.constant 0 : index
    %0 = vector.load %arg1[%c0, %c0_0, %c0_1] : memref<1x8x32xf32, #tpu.memory_space<vmem>>, vector<1x8x32xf32>
    %1 = vector.shape_cast %0 : vector<1x8x32xf32> to vector<8x32xf32>
    %c0_2 = arith.constant 0 : index
    %c0_3 = arith.constant 0 : index
    %c0_4 = arith.constant 0 : index
    %2 = vector.load %arg2[%c0_2, %c0_3, %c0_4] : memref<1x8x32xf32, #tpu.memory_space<vmem>>, vector<1x8x32xf32>
    %3 = vector.shape_cast %2 : vector<1x8x32xf32> to vector<8x32xf32>
    %4 = arith.truncf %1 : vector<8x32xf32> to vector<8x32xbf16>
    %c0_5 = arith.constant 0 : index
    %c0_6 = arith.constant 0 : index
    %5 = vector.load %arg3[%c0_5, %c0_6] : memref<32x64xbf16, #tpu.memory_space<vmem>>, vector<32x64xbf16>
    %cst = arith.constant dense<0.000000e+00> : vector<8x64xf32>
    %6 = tpu.matmul %4, %5, %cst {dimension_numbers = #tpu.dot_dimension_numbers<[1], [0], [0], [1], [0, 0, 1, 1], [], []>} : vector<8x32xbf16>, vector<32x64xbf16>, vector<8x64xf32> -> vector<8x64xf32>
    %c0_7 = arith.constant 0 : index
    %c0_8 = arith.constant 0 : index
    %7 = vector.load %arg4[%c0_7, %c0_8] : memref<1x64xf32, #tpu.memory_space<vmem>>, vector<1x64xf32>
    %8 = vector.broadcast %7 : vector<1x64xf32> to vector<8x64xf32>
    %9 = arith.addf %6, %8 : vector<8x64xf32>
    %10 = arith.truncf %3 : vector<8x32xf32> to vector<8x32xbf16>
    %c0_9 = arith.constant 0 : index
    %c0_10 = arith.constant 0 : index
    %11 = vector.load %arg5[%c0_9, %c0_10] : memref<32x32xbf16, #tpu.memory_space<vmem>>, vector<32x32xbf16>
    %cst_11 = arith.constant dense<0.000000e+00> : vector<8x32xf32>
    %12 = tpu.matmul %10, %11, %cst_11 {dimension_numbers = #tpu.dot_dimension_numbers<[1], [0], [0], [1], [0, 0, 1, 1], [], []>} : vector<8x32xbf16>, vector<32x32xbf16>, vector<8x32xf32> -> vector<8x32xf32>
    %c0_12 = arith.constant 0 : index
    %c0_13 = arith.constant 0 : index
    %13 = vector.load %arg6[%c0_12, %c0_13] : memref<1x32xf32, #tpu.memory_space<vmem>>, vector<1x32xf32>
    %14 = vector.broadcast %13 : vector<1x32xf32> to vector<8x32xf32>
    %15 = arith.addf %12, %14 : vector<8x32xf32>
    %16 = vector.extract_strided_slice %9 {offsets = [0, 0], sizes = [8, 32], strides = [1, 1]} : vector<8x64xf32> to vector<8x32xf32>
    %17 = vector.shape_cast %16 : vector<8x32xf32> to vector<1x8x32xf32>
    %18 = vector.extract_strided_slice %9 {offsets = [0, 32], sizes = [8, 32], strides = [1, 1]} : vector<8x64xf32> to vector<8x32xf32>
    %19 = vector.shape_cast %18 : vector<8x32xf32> to vector<1x8x32xf32>
    %20 = vector.shape_cast %15 : vector<8x32xf32> to vector<1x8x32xf32>
    %21 = vector.extract_strided_slice %17 {offsets = [0, 0, 0], sizes = [1, 8, 8], strides = [1, 1, 1]} : vector<1x8x32xf32> to vector<1x8x8xf32>
    %22 = vector.extract_strided_slice %17 {offsets = [0, 0, 8], sizes = [1, 8, 8], strides = [1, 1, 1]} : vector<1x8x32xf32> to vector<1x8x8xf32>
    %23 = vector.extract_strided_slice %17 {offsets = [0, 0, 16], sizes = [1, 8, 8], strides = [1, 1, 1]} : vector<1x8x32xf32> to vector<1x8x8xf32>
    %24 = vector.extract_strided_slice %17 {offsets = [0, 0, 24], sizes = [1, 8, 8], strides = [1, 1, 1]} : vector<1x8x32xf32> to vector<1x8x8xf32>
    %25 = tpu.concatenate %21, %22, %23, %24 in 0 : vector<1x8x8xf32>, vector<1x8x8xf32>, vector<1x8x8xf32>, vector<1x8x8xf32> -> vector<4x8x8xf32>
    %26 = vector.extract_strided_slice %19 {offsets = [0, 0, 0], sizes = [1, 8, 8], strides = [1, 1, 1]} : vector<1x8x32xf32> to vector<1x8x8xf32>
    %27 = vector.extract_strided_slice %19 {offsets = [0, 0, 8], sizes = [1, 8, 8], strides = [1, 1, 1]} : vector<1x8x32xf32> to vector<1x8x8xf32>
    %28 = vector.extract_strided_slice %19 {offsets = [0, 0, 16], sizes = [1, 8, 8], strides = [1, 1, 1]} : vector<1x8x32xf32> to vector<1x8x8xf32>
    %29 = vector.extract_strided_slice %19 {offsets = [0, 0, 24], sizes = [1, 8, 8], strides = [1, 1, 1]} : vector<1x8x32xf32> to vector<1x8x8xf32>
    %30 = tpu.concatenate %26, %27, %28, %29 in 0 : vector<1x8x8xf32>, vector<1x8x8xf32>, vector<1x8x8xf32>, vector<1x8x8xf32> -> vector<4x8x8xf32>
    %31 = vector.extract_strided_slice %20 {offsets = [0, 0, 0], sizes = [1, 8, 8], strides = [1, 1, 1]} : vector<1x8x32xf32> to vector<1x8x8xf32>
    %32 = vector.extract_strided_slice %20 {offsets = [0, 0, 8], sizes = [1, 8, 8], strides = [1, 1, 1]} : vector<1x8x32xf32> to vector<1x8x8xf32>
    %33 = vector.extract_strided_slice %20 {offsets = [0, 0, 16], sizes = [1, 8, 8], strides = [1, 1, 1]} : vector<1x8x32xf32> to vector<1x8x8xf32>
    %34 = vector.extract_strided_slice %20 {offsets = [0, 0, 24], sizes = [1, 8, 8], strides = [1, 1, 1]} : vector<1x8x32xf32> to vector<1x8x8xf32>
    %35 = tpu.concatenate %31, %32, %33, %34 in 0 : vector<1x8x8xf32>, vector<1x8x8xf32>, vector<1x8x8xf32>, vector<1x8x8xf32> -> vector<4x8x8xf32>
    %36 = arith.truncf %25 : vector<4x8x8xf32> to vector<4x8x8xbf16>
    %37 = arith.truncf %30 : vector<4x8x8xf32> to vector<4x8x8xbf16>
    "tpu.trace_start"() <{level = 10 : i32, message = "gqd,gkd->gqk"}> : () -> ()
    %cst_14 = arith.constant dense<0.000000e+00> : vector<4x8x8xf32>
    %38 = tpu.matmul %36, %37, %cst_14 {dimension_numbers = #tpu.dot_dimension_numbers<[2], [2], [1], [1], [0, 0, 0, 1, 1, 1], [0], [0]>} : vector<4x8x8xbf16>, vector<4x8x8xbf16>, vector<4x8x8xf32> -> vector<4x8x8xf32>
    "tpu.trace_stop"() : () -> ()
    %cst_15 = arith.constant dense<0xFF800000> : vector<4x8xf32>
    %39 = vector.multi_reduction <maximumf>, %38, %cst_15 [2] : vector<4x8x8xf32> to vector<4x8xf32>
    %40 = vector.shape_cast %39 : vector<4x8xf32> to vector<4x8x1xf32>
    %41 = vector.broadcast %40 : vector<4x8x1xf32> to vector<4x8x8xf32>
    %42 = arith.subf %38, %41 : vector<4x8x8xf32>
    %43 = math.exp %42 : vector<4x8x8xf32>
    %cst_16 = arith.constant dense<0.000000e+00> : vector<4x8xf32>
    %44 = vector.multi_reduction <add>, %43, %cst_16 [2] : vector<4x8x8xf32> to vector<4x8xf32>
    %45 = vector.shape_cast %44 : vector<4x8xf32> to vector<4x8x1xf32>
    %46 = tpu.reciprocal %45 {approx = true} : vector<4x8x1xf32> -> vector<4x8x1xf32>
    %47 = vector.broadcast %46 : vector<4x8x1xf32> to vector<4x8x8xf32>
    %48 = arith.mulf %43, %47 : vector<4x8x8xf32>
    %49 = arith.truncf %48 : vector<4x8x8xf32> to vector<4x8x8xbf16>
    %50 = arith.truncf %35 : vector<4x8x8xf32> to vector<4x8x8xbf16>
    "tpu.trace_start"() <{level = 10 : i32, message = "gqk,gkd->gqd"}> : () -> ()
    %cst_17 = arith.constant dense<0.000000e+00> : vector<4x8x8xf32>
    %51 = tpu.matmul %49, %50, %cst_17 {dimension_numbers = #tpu.dot_dimension_numbers<[2], [1], [1], [2], [0, 0, 0, 1, 1, 2], [0], [0]>} : vector<4x8x8xbf16>, vector<4x8x8xbf16>, vector<4x8x8xf32> -> vector<4x8x8xf32>
    "tpu.trace_stop"() : () -> ()
    %52 = vector.extract_strided_slice %51 {offsets = [0, 0, 0], sizes = [1, 8, 8], strides = [1, 1, 1]} : vector<4x8x8xf32> to vector<1x8x8xf32>
    %53 = vector.extract_strided_slice %51 {offsets = [1, 0, 0], sizes = [1, 8, 8], strides = [1, 1, 1]} : vector<4x8x8xf32> to vector<1x8x8xf32>
    %54 = vector.extract_strided_slice %51 {offsets = [2, 0, 0], sizes = [1, 8, 8], strides = [1, 1, 1]} : vector<4x8x8xf32> to vector<1x8x8xf32>
    %55 = vector.extract_strided_slice %51 {offsets = [3, 0, 0], sizes = [1, 8, 8], strides = [1, 1, 1]} : vector<4x8x8xf32> to vector<1x8x8xf32>
    %56 = tpu.concatenate %52, %53, %54, %55 in 2 : vector<1x8x8xf32>, vector<1x8x8xf32>, vector<1x8x8xf32>, vector<1x8x8xf32> -> vector<1x8x32xf32>
    %57 = vector.shape_cast %56 : vector<1x8x32xf32> to vector<8x32xf32>
    %58 = arith.truncf %57 : vector<8x32xf32> to vector<8x32xbf16>
    %c0_18 = arith.constant 0 : index
    %c0_19 = arith.constant 0 : index
    %59 = vector.load %arg7[%c0_18, %c0_19] : memref<32x32xbf16, #tpu.memory_space<vmem>>, vector<32x32xbf16>
    %cst_20 = arith.constant dense<0.000000e+00> : vector<8x32xf32>
    %60 = tpu.matmul %58, %59, %cst_20 {dimension_numbers = #tpu.dot_dimension_numbers<[1], [0], [0], [1], [0, 0, 1, 1], [], []>} : vector<8x32xbf16>, vector<32x32xbf16>, vector<8x32xf32> -> vector<8x32xf32>
    %c0_21 = arith.constant 0 : index
    %c0_22 = arith.constant 0 : index
    %61 = vector.load %arg8[%c0_21, %c0_22] : memref<1x32xf32, #tpu.memory_space<vmem>>, vector<1x32xf32>
    %62 = vector.broadcast %61 : vector<1x32xf32> to vector<8x32xf32>
    %63 = arith.addf %60, %62 : vector<8x32xf32>
    %64 = arith.addf %3, %63 : vector<8x32xf32>
    %cst_23 = arith.constant dense<0.000000e+00> : vector<8xf32>
    %65 = vector.multi_reduction <add>, %64, %cst_23 [1] : vector<8x32xf32> to vector<8xf32>
    %66 = vector.shape_cast %65 : vector<8xf32> to vector<8x1xf32>
    %cst_24 = arith.constant 3.200000e+01 : f32
    %67 = vector.broadcast %cst_24 : f32 to vector<8x1xf32>
    %68 = arith.divf %66, %67 : vector<8x1xf32>
    %69 = vector.broadcast %68 : vector<8x1xf32> to vector<8x32xf32>
    %70 = arith.subf %64, %69 : vector<8x32xf32>
    %71 = arith.mulf %70, %70 : vector<8x32xf32>
    %cst_25 = arith.constant dense<0.000000e+00> : vector<8xf32>
    %72 = vector.multi_reduction <add>, %71, %cst_25 [1] : vector<8x32xf32> to vector<8xf32>
    %73 = vector.shape_cast %72 : vector<8xf32> to vector<8x1xf32>
    %cst_26 = arith.constant 3.200000e+01 : f32
    %74 = vector.broadcast %cst_26 : f32 to vector<8x1xf32>
    %75 = arith.divf %73, %74 : vector<8x1xf32>
    %76 = vector.broadcast %68 : vector<8x1xf32> to vector<8x32xf32>
    %77 = arith.subf %64, %76 : vector<8x32xf32>
    %cst_27 = arith.constant 9.99999974E-6 : f32
    %78 = vector.broadcast %cst_27 : f32 to vector<8x1xf32>
    %79 = arith.addf %75, %78 : vector<8x1xf32>
    %80 = math.rsqrt %79 : vector<8x1xf32>
    %81 = vector.broadcast %80 : vector<8x1xf32> to vector<8x32xf32>
    %82 = arith.mulf %77, %81 : vector<8x32xf32>
    %c0_28 = arith.constant 0 : index
    %c0_29 = arith.constant 0 : index
    %83 = vector.load %arg9[%c0_28, %c0_29] : memref<1x32xf32, #tpu.memory_space<vmem>>, vector<1x32xf32>
    %84 = vector.broadcast %83 : vector<1x32xf32> to vector<8x32xf32>
    %85 = arith.mulf %82, %84 : vector<8x32xf32>
    %c0_30 = arith.constant 0 : index
    %c0_31 = arith.constant 0 : index
    %86 = vector.load %arg10[%c0_30, %c0_31] : memref<1x32xf32, #tpu.memory_space<vmem>>, vector<1x32xf32>
    %87 = vector.broadcast %86 : vector<1x32xf32> to vector<8x32xf32>
    %88 = arith.addf %85, %87 : vector<8x32xf32>
    %89 = arith.truncf %88 : vector<8x32xf32> to vector<8x32xbf16>
    %c0_32 = arith.constant 0 : index
    %c0_33 = arith.constant 0 : index
    %90 = vector.load %arg11[%c0_32, %c0_33] : memref<32x64xbf16, #tpu.memory_space<vmem>>, vector<32x64xbf16>
    %cst_34 = arith.constant dense<0.000000e+00> : vector<8x64xf32>
    %91 = tpu.matmul %89, %90, %cst_34 {dimension_numbers = #tpu.dot_dimension_numbers<[1], [0], [0], [1], [0, 0, 1, 1], [], []>} : vector<8x32xbf16>, vector<32x64xbf16>, vector<8x64xf32> -> vector<8x64xf32>
    %c0_35 = arith.constant 0 : index
    %c0_36 = arith.constant 0 : index
    %92 = vector.load %arg12[%c0_35, %c0_36] : memref<1x64xf32, #tpu.memory_space<vmem>>, vector<1x64xf32>
    %93 = vector.broadcast %92 : vector<1x64xf32> to vector<8x64xf32>
    %94 = arith.addf %91, %93 : vector<8x64xf32>
    %cst_37 = arith.constant 0.000000e+00 : f32
    %95 = vector.broadcast %cst_37 : f32 to vector<8x64xf32>
    %96 = arith.maximumf %94, %95 : vector<8x64xf32>
    %97 = arith.truncf %96 : vector<8x64xf32> to vector<8x64xbf16>
    %c0_38 = arith.constant 0 : index
    %c0_39 = arith.constant 0 : index
    %98 = vector.load %arg13[%c0_38, %c0_39] : memref<64x32xbf16, #tpu.memory_space<vmem>>, vector<64x32xbf16>
    %cst_40 = arith.constant dense<0.000000e+00> : vector<8x32xf32>
    %99 = tpu.matmul %97, %98, %cst_40 {dimension_numbers = #tpu.dot_dimension_numbers<[1], [0], [0], [1], [0, 0, 1, 1], [], []>} : vector<8x64xbf16>, vector<64x32xbf16>, vector<8x32xf32> -> vector<8x32xf32>
    %c0_41 = arith.constant 0 : index
    %c0_42 = arith.constant 0 : index
    %100 = vector.load %arg14[%c0_41, %c0_42] : memref<1x32xf32, #tpu.memory_space<vmem>>, vector<1x32xf32>
    %101 = vector.broadcast %100 : vector<1x32xf32> to vector<8x32xf32>
    %102 = arith.addf %99, %101 : vector<8x32xf32>
    %103 = arith.addf %88, %102 : vector<8x32xf32>
    %cst_43 = arith.constant dense<0.000000e+00> : vector<8xf32>
    %104 = vector.multi_reduction <add>, %103, %cst_43 [1] : vector<8x32xf32> to vector<8xf32>
    %105 = vector.shape_cast %104 : vector<8xf32> to vector<8x1xf32>
    %cst_44 = arith.constant 3.200000e+01 : f32
    %106 = vector.broadcast %cst_44 : f32 to vector<8x1xf32>
    %107 = arith.divf %105, %106 : vector<8x1xf32>
    %108 = vector.broadcast %107 : vector<8x1xf32> to vector<8x32xf32>
    %109 = arith.subf %103, %108 : vector<8x32xf32>
    %110 = arith.mulf %109, %109 : vector<8x32xf32>
    %cst_45 = arith.constant dense<0.000000e+00> : vector<8xf32>
    %111 = vector.multi_reduction <add>, %110, %cst_45 [1] : vector<8x32xf32> to vector<8xf32>
    %112 = vector.shape_cast %111 : vector<8xf32> to vector<8x1xf32>
    %cst_46 = arith.constant 3.200000e+01 : f32
    %113 = vector.broadcast %cst_46 : f32 to vector<8x1xf32>
    %114 = arith.divf %112, %113 : vector<8x1xf32>
    %115 = vector.broadcast %107 : vector<8x1xf32> to vector<8x32xf32>
    %116 = arith.subf %103, %115 : vector<8x32xf32>
    %cst_47 = arith.constant 9.99999974E-6 : f32
    %117 = vector.broadcast %cst_47 : f32 to vector<8x1xf32>
    %118 = arith.addf %114, %117 : vector<8x1xf32>
    %119 = math.rsqrt %118 : vector<8x1xf32>
    %120 = vector.broadcast %119 : vector<8x1xf32> to vector<8x32xf32>
    %121 = arith.mulf %116, %120 : vector<8x32xf32>
    %c0_48 = arith.constant 0 : index
    %c0_49 = arith.constant 0 : index
    %122 = vector.load %arg15[%c0_48, %c0_49] : memref<1x32xf32, #tpu.memory_space<vmem>>, vector<1x32xf32>
    %123 = vector.broadcast %122 : vector<1x32xf32> to vector<8x32xf32>
    %124 = arith.mulf %121, %123 : vector<8x32xf32>
    %c0_50 = arith.constant 0 : index
    %c0_51 = arith.constant 0 : index
    %125 = vector.load %arg16[%c0_50, %c0_51] : memref<1x32xf32, #tpu.memory_space<vmem>>, vector<1x32xf32>
    %126 = vector.broadcast %125 : vector<1x32xf32> to vector<8x32xf32>
    %127 = arith.addf %124, %126 : vector<8x32xf32>
    %128 = vector.shape_cast %127 : vector<8x32xf32> to vector<1x8x32xf32>
    %c0_52 = arith.constant 0 : index
    %c0_53 = arith.constant 0 : index
    %c0_54 = arith.constant 0 : index
    %129 = vector.load %arg17[%c0_52, %c0_53, %c0_54] : memref<1x8x32xf32, #tpu.memory_space<vmem>>, vector<1x8x32xf32>
    tpu.vector_store %arg17[%c0_52, %c0_53, %c0_54], %128 {strides = array<i32>} : memref<1x8x32xf32, #tpu.memory_space<vmem>>, vector<1x8x32xf32>,
    return
  }
  func.func @transform_0(%arg0: i32) -> (i32, i32, i32) {
    %c0_i32 = arith.constant 0 : i32
    %c0_i32_0 = arith.constant 0 : i32
    %c0_i32_1 = arith.constant 0 : i32
    return %arg0, %c0_i32, %c0_i32_0 : i32, i32, i32
  }
  func.func @transform_1(%arg0: i32) -> (i32, i32, i32) {
    %c0_i32 = arith.constant 0 : i32
    %c0_i32_0 = arith.constant 0 : i32
    %c0_i32_1 = arith.constant 0 : i32
    return %arg0, %c0_i32, %c0_i32_0 : i32, i32, i32
  }
  func.func @transform_2(%arg0: i32) -> (i32, i32) {
    %c0_i32 = arith.constant 0 : i32
    %c0_i32_0 = arith.constant 0 : i32
    %c0_i32_1 = arith.constant 0 : i32
    return %c0_i32, %c0_i32_0 : i32, i32
  }
  func.func @transform_3(%arg0: i32) -> (i32, i32) {
    %c0_i32 = arith.constant 0 : i32
    %c0_i32_0 = arith.constant 0 : i32
    %c0_i32_1 = arith.constant 0 : i32
    return %c0_i32, %c0_i32_0 : i32, i32
  }
  func.func @transform_4(%arg0: i32) -> (i32, i32) {
    %c0_i32 = arith.constant 0 : i32
    %c0_i32_0 = arith.constant 0 : i32
    %c0_i32_1 = arith.constant 0 : i32
    return %c0_i32, %c0_i32_0 : i32, i32
  }
  func.func @transform_5(%arg0: i32) -> (i32, i32) {
    %c0_i32 = arith.constant 0 : i32
    %c0_i32_0 = arith.constant 0 : i32
    %c0_i32_1 = arith.constant 0 : i32
    return %c0_i32, %c0_i32_0 : i32, i32
  }
  func.func @transform_6(%arg0: i32) -> (i32, i32) {
    %c0_i32 = arith.constant 0 : i32
    %c0_i32_0 = arith.constant 0 : i32
    %c0_i32_1 = arith.constant 0 : i32
    return %c0_i32, %c0_i32_0 : i32, i32
  }
  func.func @transform_7(%arg0: i32) -> (i32, i32) {
    %c0_i32 = arith.constant 0 : i32
    %c0_i32_0 = arith.constant 0 : i32
    %c0_i32_1 = arith.constant 0 : i32
    return %c0_i32, %c0_i32_0 : i32, i32
  }
  func.func @transform_8(%arg0: i32) -> (i32, i32) {
    %c0_i32 = arith.constant 0 : i32
    %c0_i32_0 = arith.constant 0 : i32
    %c0_i32_1 = arith.constant 0 : i32
    return %c0_i32, %c0_i32_0 : i32, i32
  }
  func.func @transform_9(%arg0: i32) -> (i32, i32) {
    %c0_i32 = arith.constant 0 : i32
    %c0_i32_0 = arith.constant 0 : i32
    %c0_i32_1 = arith.constant 0 : i32
    return %c0_i32, %c0_i32_0 : i32, i32
  }
  func.func @transform_10(%arg0: i32) -> (i32, i32) {
    %c0_i32 = arith.constant 0 : i32
    %c0_i32_0 = arith.constant 0 : i32
    %c0_i32_1 = arith.constant 0 : i32
    return %c0_i32, %c0_i32_0 : i32, i32
  }
  func.func @transform_11(%arg0: i32) -> (i32, i32) {
    %c0_i32 = arith.constant 0 : i32
    %c0_i32_0 = arith.constant 0 : i32
    %c0_i32_1 = arith.constant 0 : i32
    return %c0_i32, %c0_i32_0 : i32, i32
  }
  func.func @transform_12(%arg0: i32) -> (i32, i32) {
    %c0_i32 = arith.constant 0 : i32
    %c0_i32_0 = arith.constant 0 : i32
    %c0_i32_1 = arith.constant 0 : i32
    return %c0_i32, %c0_i32_0 : i32, i32
  }
  func.func @transform_13(%arg0: i32) -> (i32, i32) {
    %c0_i32 = arith.constant 0 : i32
    %c0_i32_0 = arith.constant 0 : i32
    %c0_i32_1 = arith.constant 0 : i32
    return %c0_i32, %c0_i32_0 : i32, i32
  }
  func.func @transform_14(%arg0: i32) -> (i32, i32) {
    %c0_i32 = arith.constant 0 : i32
    %c0_i32_0 = arith.constant 0 : i32
    %c0_i32_1 = arith.constant 0 : i32
    return %c0_i32, %c0_i32_0 : i32, i32
  }
  func.func @transform_15(%arg0: i32) -> (i32, i32) {
    %c0_i32 = arith.constant 0 : i32
    %c0_i32_0 = arith.constant 0 : i32
    %c0_i32_1 = arith.constant 0 : i32
    return %c0_i32, %c0_i32_0 : i32, i32
  }
  func.func @transform_16(%arg0: i32) -> (i32, i32, i32) {
    %c0_i32 = arith.constant 0 : i32
    %c0_i32_0 = arith.constant 0 : i32
    %c0_i32_1 = arith.constant 0 : i32
    return %arg0, %c0_i32, %c0_i32_0 : i32, i32, i32
  }
}

</mosaic_0001>

<llo_original>
// kernel: tpu_custom_call.1
$region0: #{tpu_custom_call.1}
  #allocation0 [shape = 'u32[]', space=smem, size = 0x4, offset = 0x4, fixed_abs, tag = 'smem constant byte address 0x4 - core index']
  #allocation1 [shape = 'u32[144,128]{1,0:T(1,128)}', space=vmem, size = 0x12000, scoped, tag = 'internal scratch']
  %s0 = inlined_call_operand.vmem [shape: f32[2,8,32], index: 0, kind: input, shape index: {}]
  %s1 = inlined_call_operand.vmem [shape: f32[2,8,32], index: 1, kind: input, shape index: {}]
  %s2 = inlined_call_operand.vmem [shape: bf16[32,64], index: 2, kind: input, shape index: {}]
  %s3 = inlined_call_operand.vmem [shape: f32[1,64], index: 3, kind: input, shape index: {}]
  %s4 = inlined_call_operand.hbm [shape: bf16[32,32], index: 4, kind: input, shape index: {}]
  %s5 = inlined_call_operand.vmem [shape: f32[1,32], index: 5, kind: input, shape index: {}]
  %s6 = inlined_call_operand.hbm [shape: bf16[32,32], index: 6, kind: input, shape index: {}]
  %s7 = inlined_call_operand.hbm [shape: f32[1,32], index: 7, kind: input, shape index: {}]
  %s8 = inlined_call_operand.hbm [shape: f32[1,32], index: 8, kind: input, shape index: {}]
  %s9 = inlined_call_operand.hbm [shape: f32[1,32], index: 9, kind: input, shape index: {}]
  %s10 = inlined_call_operand.vmem [shape: bf16[32,64], index: 10, kind: input, shape index: {}]
  %s11 = inlined_call_operand.vmem [shape: f32[1,64], index: 11, kind: input, shape index: {}]
  %s12 = inlined_call_operand.vmem [shape: bf16[64,32], index: 12, kind: input, shape index: {}]
  %s13 = inlined_call_operand.vmem [shape: f32[1,32], index: 13, kind: input, shape index: {}]
  %s14 = inlined_call_operand.vmem [shape: f32[1,32], index: 14, kind: input, shape index: {}]
  %s15 = inlined_call_operand.vmem [shape: f32[1,32], index: 15, kind: input, shape index: {}]
  %s16 = inlined_call_operand.hbm [shape: f32[2,8,32], index: 16, kind: output, shape index: {}]
  %s17 = sld [smem:[#allocation0]]
  $region117: #{tpu_custom_call.1} parent=0
    _
  %s19 = ssub.s32 1, %s17
  %s20 = scalar_select 0, %s19, %s17
  $region1: #{tpu_custom_call.1} parent=0
    #allocation2 [shape = 'u8[8192]{0}', space=vmem, size = 0x2000, scoped, tag = 'input window, operand 4, single buffered']
    #allocation3 [shape = 's32[2]{0}', space=sflag, size = 0x8, scoped, tag = 'scoped memory for tpu_custom_call.1']
    #allocation4 [shape = 's32[2]{0}', space=sflag, size = 0x8, scoped, tag = 'scoped memory for tpu_custom_call.1']
    #allocation5 [shape = 'u8[8192]{0}', space=vmem, size = 0x2000, scoped, tag = 'input window, operand 6, single buffered']
    #allocation6 [shape = 's32[1]{0}', space=sflag, size = 0x4, scoped, tag = 'scoped memory for tpu_custom_call.1']
    #allocation7 [shape = 'u8[512]{0}', space=vmem, size = 0x400, scoped, tag = 'input window, operand 7, single buffered']
    #allocation8 [shape = 'u8[512]{0}', space=vmem, size = 0x400, scoped, tag = 'input window, operand 8, single buffered']
    #allocation9 [shape = 's32[1]{0}', space=sflag, size = 0x4, scoped, tag = 'scoped memory for tpu_custom_call.1']
    #allocation10 [shape = 'u8[512]{0}', space=vmem, size = 0x400, scoped, tag = 'input window, operand 9, single buffered']
    #allocation11 [shape = 'u8[8192]{0}', space=vmem, size = 0x2000, scoped, tag = 'output window, operand 0']
    %21 = vsyncpa [#allocation3], 0
    %22 = vsyncpa [#allocation6], 0
    %23 = vsyncpa [#allocation9], 0
    %24 = vsyncpa [#allocation4], 0
    %s25 = scalar_lea.sflag [#allocation4], 1
    %26 = vsyncpa %s25, 0
    loop: start=0, step=1, limit=4
    $region2: #{tpu_custom_call.1} parent=1 // loop_pre_header
      _
    $region3: #{tpu_custom_call.1} parent=1 // loop_header
      %s28 = sphi 0, %s32
      %p29 = scmp.ge.s32.totalorder %s28, 4
      %s38 = sphi 0, %s40
      %s41 = sphi 0, %s38
      %s42 = sphi 0, %s41
      %s58 = sphi 0, %s42
      %s64 = sphi 0, %s66
      %s67 = sphi 0, %s64
      %s68 = sphi 0, %s67
      %s84 = sphi 0, %s68
      %s88 = sphi 0, %s88
      %s90 = sphi 0, %s88
      %s91 = sphi 0, %s90
      %s105 = sphi 0, %s91
      %s109 = sphi 0, %s109
      %s111 = sphi 0, %s109
      %s112 = sphi 0, %s111
      %s126 = sphi 0, %s112
      %s130 = sphi 0, %s130
      %s132 = sphi 0, %s130
      %s133 = sphi 0, %s132
      %s147 = sphi 0, %s133
      %s151 = sphi 0, %s151
      %s153 = sphi 0, %s151
      %s154 = sphi 0, %s153
      %s168 = sphi 0, %s154
      %s172 = sphi 0, %s172
      %s174 = sphi 0, %s172
      %s175 = sphi 0, %s174
      %s189 = sphi 0, %s175
      %s193 = sphi 0, %s193
      %s195 = sphi 0, %s193
      %s196 = sphi 0, %s195
      %s210 = sphi 0, %s196
      %s214 = sphi 0, %s214
      %s216 = sphi 0, %s214
      %s217 = sphi 0, %s216
      %s231 = sphi 0, %s217
      %s235 = sphi 0, %s235
      %s237 = sphi 0, %s235
      %s238 = sphi 0, %s237
      %s252 = sphi 0, %s238
      %s256 = sphi 0, %s256
      %s258 = sphi 0, %s256
      %s259 = sphi 0, %s258
      %s273 = sphi 0, %s259
      %s277 = sphi 0, %s277
      %s279 = sphi 0, %s277
      %s280 = sphi 0, %s279
      %s294 = sphi 0, %s280
      %s298 = sphi 0, %s298
      %s300 = sphi 0, %s298
      %s301 = sphi 0, %s300
      %s315 = sphi 0, %s301
      %s319 = sphi 0, %s319
      %s321 = sphi 0, %s319
      %s322 = sphi 0, %s321
      %s336 = sphi 0, %s322
      %s340 = sphi 0, %s340
      %s342 = sphi 0, %s340
      %s343 = sphi 0, %s342
      %s357 = sphi 0, %s343
      %s361 = sphi 0, %s361
      %s363 = sphi 0, %s361
      %s364 = sphi 0, %s363
      %s378 = sphi 0, %s364
      %s384 = sphi 0, %s386
      %s387 = sphi 0, %s384
      %s388 = sphi 0, %s387
      %s404 = sphi 0, %s388
    $region4: #{tpu_custom_call.1} parent=1 // loop_header_branch
      %31 = sbr.rel (%p29) target = $region8
    $region5: #{tpu_custom_call.1} parent=1 // loop_body
      %s33 = ssub.s32 %s28, 1
      %s34 = ssub.s32 %s28, 2
      %s35 = sadd.s32 %s28, 1
      %s36 = ssub.s32 %s28, %s35
      %p37 = scmp.eq.s32.totalorder %s36, 0
      %s39 = sadd.s32 %s38, 1
      %s40 = scalar_select %p37, %s38, %s39
      %p43 = pneg %p37
      %p44 = scmp.eq.s32.totalorder %s28, 1
      %p45 = por %p43, %p44
      %p46 = scmp.ne.s32.totalorder %s38, %s41
      %p47 = scmp.eq.s32.totalorder %s28, 0
      %p48 = por %p46, %p47
      %p49 = scmp.ne.s32.totalorder %s38, %s41
      %p50 = scmp.eq.s32.totalorder %s33, 1
      %p51 = por %p49, %p50
      %p52 = scmp.ne.s32.totalorder %s41, %s42
      %p53 = scmp.eq.s32.totalorder %s33, 0
      %p54 = por %p52, %p53
      %p55 = scmp.ne.s32.totalorder %s41, %s42
      %p56 = scmp.eq.s32.totalorder %s34, 1
      %p57 = por %p55, %p56
      %p59 = scmp.ne.s32.totalorder %s42, %s58
      %p60 = scmp.eq.s32.totalorder %s34, 0
      %p61 = por %p59, %p60
      %s62 = ssub.s32 %s28, %s35
      %p63 = scmp.eq.s32.totalorder %s62, 0
      %s65 = sadd.s32 %s64, 1
      %s66 = scalar_select %p63, %s64, %s65
      %p69 = pneg %p63
      %p70 = scmp.eq.s32.totalorder %s28, 1
      %p71 = por %p69, %p70
      %p72 = scmp.ne.s32.totalorder %s64, %s67
      %p73 = scmp.eq.s32.totalorder %s28, 0
      %p74 = por %p72, %p73
      %p75 = scmp.ne.s32.totalorder %s64, %s67
      %p76 = scmp.eq.s32.totalorder %s33, 1
      %p77 = por %p75, %p76
      %p78 = scmp.ne.s32.totalorder %s67, %s68
      %p79 = scmp.eq.s32.totalorder %s33, 0
      %p80 = por %p78, %p79
      %p81 = scmp.ne.s32.totalorder %s67, %s68
      %p82 = scmp.eq.s32.totalorder %s34, 1
      %p83 = por %p81, %p82
      %p85 = scmp.ne.s32.totalorder %s68, %s84
      %p86 = scmp.eq.s32.totalorder %s34, 0
      %p87 = por %p85, %p86
      %s89 = sadd.s32 %s88, 1
      %p92 = scmp.eq.s32.totalorder %s28, 1
      %p93 = scmp.ne.s32.totalorder %s88, %s90
      %p94 = scmp.eq.s32.totalorder %s28, 0
      %p95 = por %p93, %p94
      %p96 = scmp.ne.s32.totalorder %s88, %s90
      %p97 = scmp.eq.s32.totalorder %s33, 1
      %p98 = por %p96, %p97
      %p99 = scmp.ne.s32.totalorder %s90, %s91
      %p100 = scmp.eq.s32.totalorder %s33, 0
      %p101 = por %p99, %p100
      %p102 = scmp.ne.s32.totalorder %s90, %s91
      %p103 = scmp.eq.s32.totalorder %s34, 1
      %p104 = por %p102, %p103
      %p106 = scmp.ne.s32.totalorder %s91, %s105
      %p107 = scmp.eq.s32.totalorder %s34, 0
      %p108 = por %p106, %p107
      %s110 = sadd.s32 %s109, 1
      %p113 = scmp.eq.s32.totalorder %s28, 1
      %p114 = scmp.ne.s32.totalorder %s109, %s111
      %p115 = scmp.eq.s32.totalorder %s28, 0
      %p116 = por %p114, %p115
      %p117 = scmp.ne.s32.totalorder %s109, %s111
      %p118 = scmp.eq.s32.totalorder %s33, 1
      %p119 = por %p117, %p118
      %p120 = scmp.ne.s32.totalorder %s111, %s112
      %p121 = scmp.eq.s32.totalorder %s33, 0
      %p122 = por %p120, %p121
      %p123 = scmp.ne.s32.totalorder %s111, %s112
      %p124 = scmp.eq.s32.totalorder %s34, 1
      %p125 = por %p123, %p124
      %p127 = scmp.ne.s32.totalorder %s112, %s126
      %p128 = scmp.eq.s32.totalorder %s34, 0
      %p129 = por %p127, %p128
      %s131 = sadd.s32 %s130, 1
      %p134 = scmp.eq.s32.totalorder %s28, 1
      %p135 = scmp.ne.s32.totalorder %s130, %s132
      %p136 = scmp.eq.s32.totalorder %s28, 0
      %p137 = por %p135, %p136
      %p138 = scmp.ne.s32.totalorder %s130, %s132
      %p139 = scmp.eq.s32.totalorder %s33, 1
      %p140 = por %p138, %p139
      %p141 = scmp.ne.s32.totalorder %s132, %s133
      %p142 = scmp.eq.s32.totalorder %s33, 0
      %p143 = por %p141, %p142
      %p144 = scmp.ne.s32.totalorder %s132, %s133
      %p145 = scmp.eq.s32.totalorder %s34, 1
      %p146 = por %p144, %p145
      %p148 = scmp.ne.s32.totalorder %s133, %s147
      %p149 = scmp.eq.s32.totalorder %s34, 0
      %p150 = por %p148, %p149
      %s152 = sadd.s32 %s151, 1
      %p155 = scmp.eq.s32.totalorder %s28, 1
      %p156 = scmp.ne.s32.totalorder %s151, %s153
      %p157 = scmp.eq.s32.totalorder %s28, 0
      %p158 = por %p156, %p157
      %p159 = scmp.ne.s32.totalorder %s151, %s153
      %p160 = scmp.eq.s32.totalorder %s33, 1
      %p161 = por %p159, %p160
      %p162 = scmp.ne.s32.totalorder %s153, %s154
      %p163 = scmp.eq.s32.totalorder %s33, 0
      %p164 = por %p162, %p163
      %p165 = scmp.ne.s32.totalorder %s153, %s154
      %p166 = scmp.eq.s32.totalorder %s34, 1
      %p167 = por %p165, %p166
      %p169 = scmp.ne.s32.totalorder %s154, %s168
      %p170 = scmp.eq.s32.totalorder %s34, 0
      %p171 = por %p169, %p170
      %s173 = sadd.s32 %s172, 1
      %p176 = scmp.eq.s32.totalorder %s28, 1
      %p177 = scmp.ne.s32.totalorder %s172, %s174
      %p178 = scmp.eq.s32.totalorder %s28, 0
      %p179 = por %p177, %p178
      %p180 = scmp.ne.s32.totalorder %s172, %s174
      %p181 = scmp.eq.s32.totalorder %s33, 1
      %p182 = por %p180, %p181
      %p183 = scmp.ne.s32.totalorder %s174, %s175
      %p184 = scmp.eq.s32.totalorder %s33, 0
      %p185 = por %p183, %p184
      %p186 = scmp.ne.s32.totalorder %s174, %s175
      %p187 = scmp.eq.s32.totalorder %s34, 1
      %p188 = por %p186, %p187
      %p190 = scmp.ne.s32.totalorder %s175, %s189
      %p191 = scmp.eq.s32.totalorder %s34, 0
      %p192 = por %p190, %p191
      %s194 = sadd.s32 %s193, 1
      %p197 = scmp.eq.s32.totalorder %s28, 1
      %p198 = scmp.ne.s32.totalorder %s193, %s195
      %p199 = scmp.eq.s32.totalorder %s28, 0
      %p200 = por %p198, %p199
      %p201 = scmp.ne.s32.totalorder %s193, %s195
      %p202 = scmp.eq.s32.totalorder %s33, 1
      %p203 = por %p201, %p202
      %p204 = scmp.ne.s32.totalorder %s195, %s196
      %p205 = scmp.eq.s32.totalorder %s33, 0
      %p206 = por %p204, %p205
      %p207 = scmp.ne.s32.totalorder %s195, %s196
      %p208 = scmp.eq.s32.totalorder %s34, 1
      %p209 = por %p207, %p208
      %p211 = scmp.ne.s32.totalorder %s196, %s210
      %p212 = scmp.eq.s32.totalorder %s34, 0
      %p213 = por %p211, %p212
      %s215 = sadd.s32 %s214, 1
      %p218 = scmp.eq.s32.totalorder %s28, 1
      %p219 = scmp.ne.s32.totalorder %s214, %s216
      %p220 = scmp.eq.s32.totalorder %s28, 0
      %p221 = por %p219, %p220
      %p222 = scmp.ne.s32.totalorder %s214, %s216
      %p223 = scmp.eq.s32.totalorder %s33, 1
      %p224 = por %p222, %p223
      %p225 = scmp.ne.s32.totalorder %s216, %s217
      %p226 = scmp.eq.s32.totalorder %s33, 0
      %p227 = por %p225, %p226
      %p228 = scmp.ne.s32.totalorder %s216, %s217
      %p229 = scmp.eq.s32.totalorder %s34, 1
      %p230 = por %p228, %p229
      %p232 = scmp.ne.s32.totalorder %s217, %s231
      %p233 = scmp.eq.s32.totalorder %s34, 0
      %p234 = por %p232, %p233
      %s236 = sadd.s32 %s235, 1
      %p239 = scmp.eq.s32.totalorder %s28, 1
      %p240 = scmp.ne.s32.totalorder %s235, %s237
      %p241 = scmp.eq.s32.totalorder %s28, 0
      %p242 = por %p240, %p241
      %p243 = scmp.ne.s32.totalorder %s235, %s237
      %p244 = scmp.eq.s32.totalorder %s33, 1
      %p245 = por %p243, %p244
      %p246 = scmp.ne.s32.totalorder %s237, %s238
      %p247 = scmp.eq.s32.totalorder %s33, 0
      %p248 = por %p246, %p247
      %p249 = scmp.ne.s32.totalorder %s237, %s238
      %p250 = scmp.eq.s32.totalorder %s34, 1
      %p251 = por %p249, %p250
      %p253 = scmp.ne.s32.totalorder %s238, %s252
      %p254 = scmp.eq.s32.totalorder %s34, 0
      %p255 = por %p253, %p254
      %s257 = sadd.s32 %s256, 1
      %p260 = scmp.eq.s32.totalorder %s28, 1
      %p261 = scmp.ne.s32.totalorder %s256, %s258
      %p262 = scmp.eq.s32.totalorder %s28, 0
      %p263 = por %p261, %p262
      %p264 = scmp.ne.s32.totalorder %s256, %s258
      %p265 = scmp.eq.s32.totalorder %s33, 1
      %p266 = por %p264, %p265
      %p267 = scmp.ne.s32.totalorder %s258, %s259
      %p268 = scmp.eq.s32.totalorder %s33, 0
      %p269 = por %p267, %p268
      %p270 = scmp.ne.s32.totalorder %s258, %s259
      %p271 = scmp.eq.s32.totalorder %s34, 1
      %p272 = por %p270, %p271
      %p274 = scmp.ne.s32.totalorder %s259, %s273
      %p275 = scmp.eq.s32.totalorder %s34, 0
      %p276 = por %p274, %p275
      %s278 = sadd.s32 %s277, 1
      %p281 = scmp.eq.s32.totalorder %s28, 1
      %p282 = scmp.ne.s32.totalorder %s277, %s279
      %p283 = scmp.eq.s32.totalorder %s28, 0
      %p284 = por %p282, %p283
      %p285 = scmp.ne.s32.totalorder %s277, %s279
      %p286 = scmp.eq.s32.totalorder %s33, 1
      %p287 = por %p285, %p286
      %p288 = scmp.ne.s32.totalorder %s279, %s280
      %p289 = scmp.eq.s32.totalorder %s33, 0
      %p290 = por %p288, %p289
      %p291 = scmp.ne.s32.totalorder %s279, %s280
      %p292 = scmp.eq.s32.totalorder %s34, 1
      %p293 = por %p291, %p292
      %p295 = scmp.ne.s32.totalorder %s280, %s294
      %p296 = scmp.eq.s32.totalorder %s34, 0
      %p297 = por %p295, %p296
      %s299 = sadd.s32 %s298, 1
      %p302 = scmp.eq.s32.totalorder %s28, 1
      %p303 = scmp.ne.s32.totalorder %s298, %s300
      %p304 = scmp.eq.s32.totalorder %s28, 0
      %p305 = por %p303, %p304
      %p306 = scmp.ne.s32.totalorder %s298, %s300
      %p307 = scmp.eq.s32.totalorder %s33, 1
      %p308 = por %p306, %p307
      %p309 = scmp.ne.s32.totalorder %s300, %s301
      %p310 = scmp.eq.s32.totalorder %s33, 0
      %p311 = por %p309, %p310
      %p312 = scmp.ne.s32.totalorder %s300, %s301
      %p313 = scmp.eq.s32.totalorder %s34, 1
      %p314 = por %p312, %p313
      %p316 = scmp.ne.s32.totalorder %s301, %s315
      %p317 = scmp.eq.s32.totalorder %s34, 0
      %p318 = por %p316, %p317
      %s320 = sadd.s32 %s319, 1
      %p323 = scmp.eq.s32.totalorder %s28, 1
      %p324 = scmp.ne.s32.totalorder %s319, %s321
      %p325 = scmp.eq.s32.totalorder %s28, 0
      %p326 = por %p324, %p325
      %p327 = scmp.ne.s32.totalorder %s319, %s321
      %p328 = scmp.eq.s32.totalorder %s33, 1
      %p329 = por %p327, %p328
      %p330 = scmp.ne.s32.totalorder %s321, %s322
      %p331 = scmp.eq.s32.totalorder %s33, 0
      %p332 = por %p330, %p331
      %p333 = scmp.ne.s32.totalorder %s321, %s322
      %p334 = scmp.eq.s32.totalorder %s34, 1
      %p335 = por %p333, %p334
      %p337 = scmp.ne.s32.totalorder %s322, %s336
      %p338 = scmp.eq.s32.totalorder %s34, 0
      %p339 = por %p337, %p338
      %s341 = sadd.s32 %s340, 1
      %p344 = scmp.eq.s32.totalorder %s28, 1
      %p345 = scmp.ne.s32.totalorder %s340, %s342
      %p346 = scmp.eq.s32.totalorder %s28, 0
      %p347 = por %p345, %p346
      %p348 = scmp.ne.s32.totalorder %s340, %s342
      %p349 = scmp.eq.s32.totalorder %s33, 1
      %p350 = por %p348, %p349
      %p351 = scmp.ne.s32.totalorder %s342, %s343
      %p352 = scmp.eq.s32.totalorder %s33, 0
      %p353 = por %p351, %p352
      %p354 = scmp.ne.s32.totalorder %s342, %s343
      %p355 = scmp.eq.s32.totalorder %s34, 1
      %p356 = por %p354, %p355
      %p358 = scmp.ne.s32.totalorder %s343, %s357
      %p359 = scmp.eq.s32.totalorder %s34, 0
      %p360 = por %p358, %p359
      %s362 = sadd.s32 %s361, 1
      %p365 = scmp.eq.s32.totalorder %s28, 1
      %p366 = scmp.ne.s32.totalorder %s361, %s363
      %p367 = scmp.eq.s32.totalorder %s28, 0
      %p368 = por %p366, %p367
      %p369 = scmp.ne.s32.totalorder %s361, %s363
      %p370 = scmp.eq.s32.totalorder %s33, 1
      %p371 = por %p369, %p370
      %p372 = scmp.ne.s32.totalorder %s363, %s364
      %p373 = scmp.eq.s32.totalorder %s33, 0
      %p374 = por %p372, %p373
      %p375 = scmp.ne.s32.totalorder %s363, %s364
      %p376 = scmp.eq.s32.totalorder %s34, 1
      %p377 = por %p375, %p376
      %p379 = scmp.ne.s32.totalorder %s364, %s378
      %p380 = scmp.eq.s32.totalorder %s34, 0
      %p381 = por %p379, %p380
      %s382 = ssub.s32 %s28, %s35
      %p383 = scmp.eq.s32.totalorder %s382, 0
      %s385 = sadd.s32 %s384, 1
      %s386 = scalar_select %p383, %s384, %s385
      %p389 = pneg %p383
      %p390 = scmp.eq.s32.totalorder %s28, 1
      %p391 = por %p389, %p390
      %p392 = scmp.ne.s32.totalorder %s384, %s387
      %p393 = scmp.eq.s32.totalorder %s28, 0
      %p394 = por %p392, %p393
      %p395 = scmp.ne.s32.totalorder %s384, %s387
      %p396 = scmp.eq.s32.totalorder %s33, 1
      %p397 = por %p395, %p396
      %p398 = scmp.ne.s32.totalorder %s387, %s388
      %p399 = scmp.eq.s32.totalorder %s33, 0
      %p400 = por %p398, %p399
      %p401 = scmp.ne.s32.totalorder %s387, %s388
      %p402 = scmp.eq.s32.totalorder %s34, 1
      %p403 = por %p401, %p402
      %p405 = scmp.ne.s32.totalorder %s388, %s404
      %p406 = scmp.eq.s32.totalorder %s34, 0
      %p407 = por %p405, %p406
      %p408 = scmp.le.s32.totalorder 1, %s28
      %p409 = scmp.lt.s32.totalorder %s28, 3
      %p410 = pnand %p408, %p409
      %p411 = pneg %p410
      // Predicated region
      $region9: #{tpu_custom_call.1} parent=5 // pred_check
        _
      $region10: #{tpu_custom_call.1} parent=5 // pred_check_branch
        %413 = sbr.rel (%p410) target = $region12
      $region11: #{tpu_custom_call.1} parent=5 // pred_region
        %s414 = ssub.s32 %s28, 1
        // Predicated region
        $region13: #{tpu_custom_call.1} parent=11 // pred_check
          %p415 = pneg %p101
        $region14: #{tpu_custom_call.1} parent=11 // pred_check_branch
          %417 = sbr.rel (%p415) target = $region16
        $region15: #{tpu_custom_call.1} parent=11 // pred_region
          _
        $region16: #{tpu_custom_call.1} parent=11 // pred_fallthru
          _
        // Predicated region
        $region17: #{tpu_custom_call.1} parent=11 // pred_check
          %p418 = pneg %p122
        $region18: #{tpu_custom_call.1} parent=11 // pred_check_branch
          %420 = sbr.rel (%p418) target = $region20
        $region19: #{tpu_custom_call.1} parent=11 // pred_region
          _
        $region20: #{tpu_custom_call.1} parent=11 // pred_fallthru
          _
        // Predicated region
        $region21: #{tpu_custom_call.1} parent=11 // pred_check
          %p421 = pneg %p143
        $region22: #{tpu_custom_call.1} parent=11 // pred_check_branch
          %423 = sbr.rel (%p421) target = $region24
        $region23: #{tpu_custom_call.1} parent=11 // pred_region
          %s425 = ssub.s32 256, 256
          %426 = vsyncadd [#allocation3], %s425
          %s427 = sshll.u32 [#allocation2], 4
          %s428 = int_to_ptr.vmem [resolvable:$true] %s427
          %433 = dma.hbm_to_vmem [thread:$0]  %s4, 256, %s428, [#allocation3], 64, 64, 4
        $region24: #{tpu_custom_call.1} parent=11 // pred_fallthru
          _
        // Predicated region
        $region25: #{tpu_custom_call.1} parent=11 // pred_check
          %p434 = pneg %p164
        $region26: #{tpu_custom_call.1} parent=11 // pred_check_branch
          %436 = sbr.rel (%p434) target = $region28
        $region27: #{tpu_custom_call.1} parent=11 // pred_region
          _
        $region28: #{tpu_custom_call.1} parent=11 // pred_fallthru
          _
        // Predicated region
        $region29: #{tpu_custom_call.1} parent=11 // pred_check
          %p437 = pneg %p185
        $region30: #{tpu_custom_call.1} parent=11 // pred_check_branch
          %439 = sbr.rel (%p437) target = $region32
        $region31: #{tpu_custom_call.1} parent=11 // pred_region
          %s441 = ssub.s32 256, 256
          %442 = vsyncadd [#allocation6], %s441
          %s443 = sshll.u32 [#allocation5], 4
          %s444 = int_to_ptr.vmem [resolvable:$true] %s443
          %449 = dma.hbm_to_vmem [thread:$0]  %s6, 256, %s444, [#allocation6], 64, 64, 4
        $region32: #{tpu_custom_call.1} parent=11 // pred_fallthru
          _
        // Predicated region
        $region33: #{tpu_custom_call.1} parent=11 // pred_check
          %p450 = pneg %p206
        $region34: #{tpu_custom_call.1} parent=11 // pred_check_branch
          %452 = sbr.rel (%p450) target = $region36
        $region35: #{tpu_custom_call.1} parent=11 // pred_region
          %s454 = ssub.s32 16, 16
          %455 = vsyncadd [#allocation6], %s454
          %s457 = sshll.u32 [#allocation7], 4
          %s458 = int_to_ptr.vmem [resolvable:$true] %s457
          %460 = dma.hbm_to_vmem [thread:$0]  %s7, 16, %s458, [#allocation6]
        $region36: #{tpu_custom_call.1} parent=11 // pred_fallthru
          _
        // Predicated region
        $region37: #{tpu_custom_call.1} parent=11 // pred_check
          %p461 = pneg %p227
        $region38: #{tpu_custom_call.1} parent=11 // pred_check_branch
          %463 = sbr.rel (%p461) target = $region40
        $region39: #{tpu_custom_call.1} parent=11 // pred_region
          %s465 = ssub.s32 16, 16
          %466 = vsyncadd [#allocation9], %s465
          %s468 = sshll.u32 [#allocation8], 4
          %s469 = int_to_ptr.vmem [resolvable:$true] %s468
          %471 = dma.hbm_to_vmem [thread:$0]  %s8, 16, %s469, [#allocation9]
        $region40: #{tpu_custom_call.1} parent=11 // pred_fallthru
          _
        // Predicated region
        $region41: #{tpu_custom_call.1} parent=11 // pred_check
          %p472 = pneg %p248
        $region42: #{tpu_custom_call.1} parent=11 // pred_check_branch
          %474 = sbr.rel (%p472) target = $region44
        $region43: #{tpu_custom_call.1} parent=11 // pred_region
          %s476 = ssub.s32 16, 16
          %477 = vsyncadd [#allocation9], %s476
          %s479 = sshll.u32 [#allocation10], 4
          %s480 = int_to_ptr.vmem [resolvable:$true] %s479
          %482 = dma.hbm_to_vmem [thread:$0]  %s9, 16, %s480, [#allocation9]
        $region44: #{tpu_custom_call.1} parent=11 // pred_fallthru
          _
        // Predicated region
        $region45: #{tpu_custom_call.1} parent=11 // pred_check
          %p483 = pneg %p269
        $region46: #{tpu_custom_call.1} parent=11 // pred_check_branch
          %485 = sbr.rel (%p483) target = $region48
        $region47: #{tpu_custom_call.1} parent=11 // pred_region
          _
        $region48: #{tpu_custom_call.1} parent=11 // pred_fallthru
          _
        // Predicated region
        $region49: #{tpu_custom_call.1} parent=11 // pred_check
          %p486 = pneg %p290
        $region50: #{tpu_custom_call.1} parent=11 // pred_check_branch
          %488 = sbr.rel (%p486) target = $region52
        $region51: #{tpu_custom_call.1} parent=11 // pred_region
          _
        $region52: #{tpu_custom_call.1} parent=11 // pred_fallthru
          _
        // Predicated region
        $region53: #{tpu_custom_call.1} parent=11 // pred_check
          %p489 = pneg %p311
        $region54: #{tpu_custom_call.1} parent=11 // pred_check_branch
          %491 = sbr.rel (%p489) target = $region56
        $region55: #{tpu_custom_call.1} parent=11 // pred_region
          _
        $region56: #{tpu_custom_call.1} parent=11 // pred_fallthru
          _
        // Predicated region
        $region57: #{tpu_custom_call.1} parent=11 // pred_check
          %p492 = pneg %p332
        $region58: #{tpu_custom_call.1} parent=11 // pred_check_branch
          %494 = sbr.rel (%p492) target = $region60
        $region59: #{tpu_custom_call.1} parent=11 // pred_region
          _
        $region60: #{tpu_custom_call.1} parent=11 // pred_fallthru
          _
        // Predicated region
        $region61: #{tpu_custom_call.1} parent=11 // pred_check
          %p495 = pneg %p353
        $region62: #{tpu_custom_call.1} parent=11 // pred_check_branch
          %497 = sbr.rel (%p495) target = $region64
        $region63: #{tpu_custom_call.1} parent=11 // pred_region
          _
        $region64: #{tpu_custom_call.1} parent=11 // pred_fallthru
          _
        // Predicated region
        $region65: #{tpu_custom_call.1} parent=11 // pred_check
          %p498 = pneg %p374
        $region66: #{tpu_custom_call.1} parent=11 // pred_check_branch
          %500 = sbr.rel (%p498) target = $region68
        $region67: #{tpu_custom_call.1} parent=11 // pred_region
          _
        $region68: #{tpu_custom_call.1} parent=11 // pred_fallthru
          _
      $region12: #{tpu_custom_call.1} parent=5 // pred_fallthru
        _
      %p501 = scmp.lt.s32.totalorder %s28, 2
      // Predicated region
      $region69: #{tpu_custom_call.1} parent=5 // pred_check
        %p502 = pneg %p501
      $region70: #{tpu_custom_call.1} parent=5 // pred_check_branch
        %504 = sbr.rel (%p502) target = $region72
      $region71: #{tpu_custom_call.1} parent=5 // pred_region
        // Predicated region
        $region73: #{tpu_custom_call.1} parent=71 // pred_check
          %p505 = pneg %p48
        $region74: #{tpu_custom_call.1} parent=71 // pred_check_branch
          %507 = sbr.rel (%p505) target = $region76
        $region75: #{tpu_custom_call.1} parent=71 // pred_region
          %p508 = scmp.lt.s32.totalorder %s28, 1
          %s509 = scalar_select %p508, %s28, 1
          %s510 = smul.addr %s509, 8
          %s511 = scalar_lea.vmem %s0, %s510
        $region76: #{tpu_custom_call.1} parent=71 // pred_fallthru
          _
        // Predicated region
        $region77: #{tpu_custom_call.1} parent=71 // pred_check
          %p512 = pneg %p74
        $region78: #{tpu_custom_call.1} parent=71 // pred_check_branch
          %514 = sbr.rel (%p512) target = $region80
        $region79: #{tpu_custom_call.1} parent=71 // pred_region
          %p515 = scmp.lt.s32.totalorder %s28, 1
          %s516 = scalar_select %p515, %s28, 1
          %s517 = smul.addr %s516, 8
          %s518 = scalar_lea.vmem %s1, %s517
        $region80: #{tpu_custom_call.1} parent=71 // pred_fallthru
          _
      $region72: #{tpu_custom_call.1} parent=5 // pred_fallthru
        _
      %p519 = scmp.le.s32.totalorder 1, %s28
      %p520 = scmp.lt.s32.totalorder %s28, 3
      %p521 = pnand %p519, %p520
      %p522 = pneg %p521
      // Predicated region
      $region81: #{tpu_custom_call.1} parent=5 // pred_check
        _
      $region82: #{tpu_custom_call.1} parent=5 // pred_check_branch
        %524 = sbr.rel (%p521) target = $region84
      $region83: #{tpu_custom_call.1} parent=5 // pred_region
        %s525 = ssub.s32 %s28, 1
        // Predicated region
        $region85: #{tpu_custom_call.1} parent=83 // pred_check
          %p526 = pneg %p143
        $region86: #{tpu_custom_call.1} parent=83 // pred_check_branch
          %528 = sbr.rel (%p526) target = $region88
        $region87: #{tpu_custom_call.1} parent=83 // pred_region
          %529 = dma.done [#allocation3], 256
        $region88: #{tpu_custom_call.1} parent=83 // pred_fallthru
          _
        // Predicated region
        $region89: #{tpu_custom_call.1} parent=83 // pred_check
          %p530 = pneg %p185
        $region90: #{tpu_custom_call.1} parent=83 // pred_check_branch
          %532 = sbr.rel (%p530) target = $region92
        $region91: #{tpu_custom_call.1} parent=83 // pred_region
          %533 = dma.done [#allocation6], 256
        $region92: #{tpu_custom_call.1} parent=83 // pred_fallthru
          _
        // Predicated region
        $region93: #{tpu_custom_call.1} parent=83 // pred_check
          %p534 = pneg %p206
        $region94: #{tpu_custom_call.1} parent=83 // pred_check_branch
          %536 = sbr.rel (%p534) target = $region96
        $region95: #{tpu_custom_call.1} parent=83 // pred_region
          %537 = dma.done [#allocation6], 16
        $region96: #{tpu_custom_call.1} parent=83 // pred_fallthru
          _
        // Predicated region
        $region97: #{tpu_custom_call.1} parent=83 // pred_check
          %p538 = pneg %p227
        $region98: #{tpu_custom_call.1} parent=83 // pred_check_branch
          %540 = sbr.rel (%p538) target = $region100
        $region99: #{tpu_custom_call.1} parent=83 // pred_region
          %541 = dma.done [#allocation9], 16
        $region100: #{tpu_custom_call.1} parent=83 // pred_fallthru
          _
        // Predicated region
        $region101: #{tpu_custom_call.1} parent=83 // pred_check
          %p542 = pneg %p248
        $region102: #{tpu_custom_call.1} parent=83 // pred_check_branch
          %544 = sbr.rel (%p542) target = $region104
        $region103: #{tpu_custom_call.1} parent=83 // pred_region
          %545 = dma.done [#allocation9], 16
        $region104: #{tpu_custom_call.1} parent=83 // pred_fallthru
          _
        %p546 = scmp.lt.s32.totalorder %s33, 1
        %s547 = scalar_select %p546, %s33, 1
        %s548 = smul.addr %s547, 8
        %s549 = scalar_lea.vmem %s0, %s548
        %p550 = pneg %p54
        %p551 = pneg %p51
        %p552 = scmp.lt.s32.totalorder %s33, 1
        %s553 = scalar_select %p552, %s33, 1
        %s554 = smul.addr %s553, 8
        %s555 = scalar_lea.vmem %s1, %s554
        %p556 = pneg %p80
        %p557 = pneg %p77
        %p558 = pneg %p101
        %p559 = pneg %p98
        %p560 = pneg %p122
        %p561 = pneg %p119
        %p562 = pneg %p143
        %p563 = pneg %p140
        %p564 = pneg %p164
        %p565 = pneg %p161
        %p566 = pneg %p185
        %p567 = pneg %p182
        %p568 = pneg %p206
        %p569 = pneg %p203
        %p570 = pneg %p227
        %p571 = pneg %p224
        %p572 = pneg %p248
        %p573 = pneg %p245
        %p574 = pneg %p269
        %p575 = pneg %p266
        %p576 = pneg %p290
        %p577 = pneg %p287
        %p578 = pneg %p311
        %p579 = pneg %p308
        %p580 = pneg %p332
        %p581 = pneg %p329
        %p582 = pneg %p353
        %p583 = pneg %p350
        %p584 = pneg %p374
        %p585 = pneg %p371
        %p586 = pneg %p400
        %p587 = pneg %p397
        %s588 = sand.u32 %s387, 1
        %s589 = scalar_lea.sflag [#allocation4], %s588
        %s590 = sand.u32 %s387, 1
        %s591 = smul.addr %s590, 8
        %s592 = scalar_lea.vmem [#allocation11], %s591
        %p593 = scmp.lt.s32.totalorder %s33, 1
        %s594 = scalar_select %p593, %s33, 1
        %s595 = smul.addr %s594, 8
        %s596 = scalar_lea.vmem %s0, %s595
        %p597 = scmp.lt.s32.totalorder %s33, 1
        %s598 = scalar_select %p597, %s33, 1
        %s599 = smul.addr %s598, 8
        %s600 = scalar_lea.vmem %s1, %s599
        %v602 = vld [vmem:[%s596] sm:$0xff]
        %v603 = vld [vmem:[%s600] sm:$0xff]
        %v604 = vpack.c.bf16 %v602, %v602
        %v605 = vld [vmem:[%s2] sm:$0xf]
        %v606 = vld [vmem:[%s2 + $0x4] sm:$0xf]
        %v607 = vld [vmem:[%s2 + $0x8] sm:$0xf]
        %v608 = vld [vmem:[%s2 + $0xc] sm:$0xf]
        %v609 = vld [vmem:[%s3] sm:$0x1]
        %v611 = vlaneseq
        %v612 = vshrl.u32 %v611, 7
        %v613 = vsub.s32 0, %v612
        %v614 = vrot.slane %v609, %v613
        %v620 = vunpack.c.l.b16 %v605
        %v621 = vunpack.c.l.b16 %v606
        %v622 = vunpack.c.l.b16 %v607
        %v623 = vunpack.c.l.b16 %v608
        %v624 = vpack.c.b16 %v621, %v620
        %v625 = vpack.c.b16 %v623, %v622
        %vm628 = vcmask 261120
        %v630 = vsel %vm628, %v604, 0
        %632 = vmatprep.subr.bf16.mxu0 0
        %633 = vmatpush1.bf16.msra.mxu0 %v624
        %634 = vmatprep.subr.bf16.mxu0 0
        %635 = vmatpush1.bf16.msra.mxu0 %v625
        %636 = vmatprep.subr.bf16.mxu0 0
        %637 = vmatpush1.bf16.msra.mxu0 0
        %638 = vmatprep.subr.bf16.mxu0 0
        %639 = vmatpush1.bf16.msra.mxu0 0
        %640 = vmatprep.subr.bf16.mxu0 0
        %641 = vmatpush1.bf16.msra.mxu0 0
        %642 = vmatprep.subr.bf16.mxu0 0
        %643 = vmatpush1.bf16.msra.mxu0 0
        %644 = vmatprep.subr.bf16.mxu0 0
        %645 = vmatpush1.bf16.msra.mxu0 0
        %646 = vmatprep.subr.bf16.mxu0 0
        %647 = vmatpush1.bf16.msra.mxu0 0
        %648 = vmatprep.subr.bf16.mxu0 0
        %649 = vmatpush1.bf16.msra.mxu0 0
        %650 = vmatprep.subr.bf16.mxu0 0
        %651 = vmatpush1.bf16.msra.mxu0 0
        %652 = vmatprep.subr.bf16.mxu0 0
        %653 = vmatpush1.bf16.msra.mxu0 0
        %654 = vmatprep.subr.bf16.mxu0 0
        %655 = vmatpush1.bf16.msra.mxu0 0
        %656 = vmatprep.subr.bf16.mxu0 0
        %657 = vmatpush1.bf16.msra.mxu0 0
        %658 = vmatprep.subr.bf16.mxu0 0
        %659 = vmatpush1.bf16.msra.mxu0 0
        %660 = vmatprep.subr.bf16.mxu0 0
        %661 = vmatpush1.bf16.msra.mxu0 0
        %662 = vmatprep.subr.bf16.mxu0 0
        %663 = vmatpush1.bf16.msra.mxu0 0
        %664 = vmatprep.mubr.bf16.mxu0 0
        %665 = vmatmul.mubr.bf16.gmra.mrb[0].mxu0 %v630
        %v666 = vpop.f32.mrb[0].mxu0
        %v667 = vadd.f32 %v614, %v666
        %v668 = vpop.f32.mrb[0].mxu0
        %v669 = vpop.f32.mrb[0].mxu0
        %v670 = vpop.f32.mrb[0].mxu0
        %671 = vdwg.mxu0
        %v672 = vpack.c.bf16 %v603, %v603
        %v673 = vld [vmem:[#allocation2] sm:$0xf]
        %v674 = vld [vmem:[#allocation2 + $0x4] sm:$0xf]
        %v675 = vld [vmem:[#allocation2 + $0x8] sm:$0xf]
        %v676 = vld [vmem:[#allocation2 + $0xc] sm:$0xf]
        %v677 = vld [vmem:[%s5] sm:$0x1]
        %v679 = vlaneseq
        %v680 = vshrl.u32 %v679, 7
        %v681 = vsub.s32 0, %v680
        %v682 = vrot.slane %v677, %v681
        %v688 = vunpack.c.l.b16 %v673
        %v689 = vunpack.c.l.b16 %v674
        %v690 = vunpack.c.l.b16 %v675
        %v691 = vunpack.c.l.b16 %v676
        %v692 = vpack.c.b16 %v689, %v688
        %v693 = vpack.c.b16 %v691, %v690
        %v697 = vsel %vm628, %v672, 0
        %699 = vmatprep.subr.bf16.mxu0 0
        %700 = vmatpush1.bf16.msra.mxu0 %v692
        %701 = vmatprep.subr.bf16.mxu0 0
        %702 = vmatpush1.bf16.msra.mxu0 %v693
        %703 = vmatprep.subr.bf16.mxu0 0
        %704 = vmatpush1.bf16.msra.mxu0 0
        %705 = vmatprep.subr.bf16.mxu0 0
        %706 = vmatpush1.bf16.msra.mxu0 0
        %707 = vmatprep.subr.bf16.mxu0 0
        %708 = vmatpush1.bf16.msra.mxu0 0
        %709 = vmatprep.subr.bf16.mxu0 0
        %710 = vmatpush1.bf16.msra.mxu0 0
        %711 = vmatprep.subr.bf16.mxu0 0
        %712 = vmatpush1.bf16.msra.mxu0 0
        %713 = vmatprep.subr.bf16.mxu0 0
        %714 = vmatpush1.bf16.msra.mxu0 0
        %715 = vmatprep.subr.bf16.mxu0 0
        %716 = vmatpush1.bf16.msra.mxu0 0
        %717 = vmatprep.subr.bf16.mxu0 0
        %718 = vmatpush1.bf16.msra.mxu0 0
        %719 = vmatprep.subr.bf16.mxu0 0
        %720 = vmatpush1.bf16.msra.mxu0 0
        %721 = vmatprep.subr.bf16.mxu0 0
        %722 = vmatpush1.bf16.msra.mxu0 0
        %723 = vmatprep.subr.bf16.mxu0 0
        %724 = vmatpush1.bf16.msra.mxu0 0
        %725 = vmatprep.subr.bf16.mxu0 0
        %726 = vmatpush1.bf16.msra.mxu0 0
        %727 = vmatprep.subr.bf16.mxu0 0
        %728 = vmatpush1.bf16.msra.mxu0 0
        %729 = vmatprep.subr.bf16.mxu0 0
        %730 = vmatpush1.bf16.msra.mxu0 0
        %731 = vmatprep.mubr.bf16.mxu0 0
        %732 = vmatmul.mubr.bf16.gmra.mrb[0].mxu0 %v697
        %v733 = vpop.f32.mrb[0].mxu0
        %v734 = vadd.f32 %v682, %v733
        %v735 = vpop.f32.mrb[0].mxu0
        %v736 = vpop.f32.mrb[0].mxu0
        %v737 = vpop.f32.mrb[0].mxu0
        %738 = vdwg.mxu0
        %740 = vrot.lane.b32.xlu0 %v667, 120
        %v741 = vpop.permute.xlu0 %740
        %743 = vrot.lane.b32.xlu0 %v667, 112
        %v744 = vpop.permute.xlu0 %743
        %746 = vrot.lane.b32.xlu0 %v667, 104
        %v747 = vpop.permute.xlu0 %746
        %750 = vrot.lane.b32.xlu0 %v734, 120
        %v751 = vpop.permute.xlu0 %750
        %753 = vrot.lane.b32.xlu0 %v734, 112
        %v754 = vpop.permute.xlu0 %753
        %756 = vrot.lane.b32.xlu0 %v734, 104
        %v757 = vpop.permute.xlu0 %756
        %v759 = vpack.c.bf16 %v667, %v667
        %v760 = vpack.c.bf16 %v741, %v741
        %v761 = vpack.c.bf16 %v744, %v744
        %v762 = vpack.c.bf16 %v747, %v747
        %764 = vrot.lane.b32.xlu0 %v759, 96
        %v765 = vpop.permute.xlu0 %764
        %vm766 = vcmask 64512
        %v768 = vsel %vm766, %v759, 0
        %v771 = vsel %vm766, %v765, 0
        %773 = vmatprep.subr.bf16.mxu0 0
        %774 = vmatpush1.bf16.xpose.msra.mxu0 %v771
        %775 = vmatprep.subr.bf16.mxu0 0
        %776 = vmatpush1.bf16.xpose.msra.mxu0 0
        %777 = vmatprep.subr.bf16.mxu0 0
        %778 = vmatpush1.bf16.xpose.msra.mxu0 0
        %779 = vmatprep.subr.bf16.mxu0 0
        %780 = vmatpush1.bf16.xpose.msra.mxu0 0
        %781 = vmatprep.subr.bf16.mxu0 0
        %782 = vmatpush1.bf16.xpose.msra.mxu0 0
        %783 = vmatprep.subr.bf16.mxu0 0
        %784 = vmatpush1.bf16.xpose.msra.mxu0 0
        %785 = vmatprep.subr.bf16.mxu0 0
        %786 = vmatpush1.bf16.xpose.msra.mxu0 0
        %787 = vmatprep.subr.bf16.mxu0 0
        %788 = vmatpush1.bf16.xpose.msra.mxu0 0
        %789 = vmatprep.subr.bf16.mxu0 0
        %790 = vmatpush1.bf16.xpose.msra.mxu0 0
        %791 = vmatprep.subr.bf16.mxu0 0
        %792 = vmatpush1.bf16.xpose.msra.mxu0 0
        %793 = vmatprep.subr.bf16.mxu0 0
        %794 = vmatpush1.bf16.xpose.msra.mxu0 0
        %795 = vmatprep.subr.bf16.mxu0 0
        %796 = vmatpush1.bf16.xpose.msra.mxu0 0
        %797 = vmatprep.subr.bf16.mxu0 0
        %798 = vmatpush1.bf16.xpose.msra.mxu0 0
        %799 = vmatprep.subr.bf16.mxu0 0
        %800 = vmatpush1.bf16.xpose.msra.mxu0 0
        %801 = vmatprep.subr.bf16.mxu0 0
        %802 = vmatpush1.bf16.xpose.msra.mxu0 0
        %803 = vmatprep.subr.bf16.mxu0 0
        %804 = vmatpush1.bf16.xpose.msra.mxu0 0
        %805 = vmatprep.mubr.bf16.mxu0 0
        %806 = vmatmul.mubr.bf16.gmra.mrb[0].mxu0 %v768
        %v807 = vpop.f32.mrb[0].mxu0
        %v808 = vadd.f32 0.0, %v807
        %v809 = vpop.f32.mrb[0].mxu0
        %v810 = vpop.f32.mrb[0].mxu0
        %v811 = vpop.f32.mrb[0].mxu0
        %812 = vdwg.mxu0
        %814 = vrot.lane.b32.xlu0 %v760, 96
        %v815 = vpop.permute.xlu0 %814
        %v817 = vsel %vm766, %v760, 0
        %v820 = vsel %vm766, %v815, 0
        %822 = vmatprep.subr.bf16.mxu0 0
        %823 = vmatpush1.bf16.xpose.msra.mxu0 %v820
        %824 = vmatprep.subr.bf16.mxu0 0
        %825 = vmatpush1.bf16.xpose.msra.mxu0 0
        %826 = vmatprep.subr.bf16.mxu0 0
        %827 = vmatpush1.bf16.xpose.msra.mxu0 0
        %828 = vmatprep.subr.bf16.mxu0 0
        %829 = vmatpush1.bf16.xpose.msra.mxu0 0
        %830 = vmatprep.subr.bf16.mxu0 0
        %831 = vmatpush1.bf16.xpose.msra.mxu0 0
        %832 = vmatprep.subr.bf16.mxu0 0
        %833 = vmatpush1.bf16.xpose.msra.mxu0 0
        %834 = vmatprep.subr.bf16.mxu0 0
        %835 = vmatpush1.bf16.xpose.msra.mxu0 0
        %836 = vmatprep.subr.bf16.mxu0 0
        %837 = vmatpush1.bf16.xpose.msra.mxu0 0
        %838 = vmatprep.subr.bf16.mxu0 0
        %839 = vmatpush1.bf16.xpose.msra.mxu0 0
        %840 = vmatprep.subr.bf16.mxu0 0
        %841 = vmatpush1.bf16.xpose.msra.mxu0 0
        %842 = vmatprep.subr.bf16.mxu0 0
        %843 = vmatpush1.bf16.xpose.msra.mxu0 0
        %844 = vmatprep.subr.bf16.mxu0 0
        %845 = vmatpush1.bf16.xpose.msra.mxu0 0
        %846 = vmatprep.subr.bf16.mxu0 0
        %847 = vmatpush1.bf16.xpose.msra.mxu0 0
        %848 = vmatprep.subr.bf16.mxu0 0
        %849 = vmatpush1.bf16.xpose.msra.mxu0 0
        %850 = vmatprep.subr.bf16.mxu0 0
        %851 = vmatpush1.bf16.xpose.msra.mxu0 0
        %852 = vmatprep.subr.bf16.mxu0 0
        %853 = vmatpush1.bf16.xpose.msra.mxu0 0
        %854 = vmatprep.mubr.bf16.mxu0 0
        %855 = vmatmul.mubr.bf16.gmra.mrb[0].mxu0 %v817
        %v856 = vpop.f32.mrb[0].mxu0
        %v857 = vadd.f32 0.0, %v856
        %v858 = vpop.f32.mrb[0].mxu0
        %v859 = vpop.f32.mrb[0].mxu0
        %v860 = vpop.f32.mrb[0].mxu0
        %861 = vdwg.mxu0
        %863 = vrot.lane.b32.xlu0 %v761, 96
        %v864 = vpop.permute.xlu0 %863
        %v866 = vsel %vm766, %v761, 0
        %v869 = vsel %vm766, %v864, 0
        %871 = vmatprep.subr.bf16.mxu0 0
        %872 = vmatpush1.bf16.xpose.msra.mxu0 %v869
        %873 = vmatprep.subr.bf16.mxu0 0
        %874 = vmatpush1.bf16.xpose.msra.mxu0 0
        %875 = vmatprep.subr.bf16.mxu0 0
        %876 = vmatpush1.bf16.xpose.msra.mxu0 0
        %877 = vmatprep.subr.bf16.mxu0 0
        %878 = vmatpush1.bf16.xpose.msra.mxu0 0
        %879 = vmatprep.subr.bf16.mxu0 0
        %880 = vmatpush1.bf16.xpose.msra.mxu0 0
        %881 = vmatprep.subr.bf16.mxu0 0
        %882 = vmatpush1.bf16.xpose.msra.mxu0 0
        %883 = vmatprep.subr.bf16.mxu0 0
        %884 = vmatpush1.bf16.xpose.msra.mxu0 0
        %885 = vmatprep.subr.bf16.mxu0 0
        %886 = vmatpush1.bf16.xpose.msra.mxu0 0
        %887 = vmatprep.subr.bf16.mxu0 0
        %888 = vmatpush1.bf16.xpose.msra.mxu0 0
        %889 = vmatprep.subr.bf16.mxu0 0
        %890 = vmatpush1.bf16.xpose.msra.mxu0 0
        %891 = vmatprep.subr.bf16.mxu0 0
        %892 = vmatpush1.bf16.xpose.msra.mxu0 0
        %893 = vmatprep.subr.bf16.mxu0 0
        %894 = vmatpush1.bf16.xpose.msra.mxu0 0
        %895 = vmatprep.subr.bf16.mxu0 0
        %896 = vmatpush1.bf16.xpose.msra.mxu0 0
        %897 = vmatprep.subr.bf16.mxu0 0
        %898 = vmatpush1.bf16.xpose.msra.mxu0 0
        %899 = vmatprep.subr.bf16.mxu0 0
        %900 = vmatpush1.bf16.xpose.msra.mxu0 0
        %901 = vmatprep.subr.bf16.mxu0 0
        %902 = vmatpush1.bf16.xpose.msra.mxu0 0
        %903 = vmatprep.mubr.bf16.mxu0 0
        %904 = vmatmul.mubr.bf16.gmra.mrb[0].mxu0 %v866
        %v905 = vpop.f32.mrb[0].mxu0
        %v906 = vadd.f32 0.0, %v905
        %v907 = vpop.f32.mrb[0].mxu0
        %v908 = vpop.f32.mrb[0].mxu0
        %v909 = vpop.f32.mrb[0].mxu0
        %910 = vdwg.mxu0
        %912 = vrot.lane.b32.xlu0 %v762, 96
        %v913 = vpop.permute.xlu0 %912
        %v915 = vsel %vm766, %v762, 0
        %v918 = vsel %vm766, %v913, 0
        %920 = vmatprep.subr.bf16.mxu0 0
        %921 = vmatpush1.bf16.xpose.msra.mxu0 %v918
        %922 = vmatprep.subr.bf16.mxu0 0
        %923 = vmatpush1.bf16.xpose.msra.mxu0 0
        %924 = vmatprep.subr.bf16.mxu0 0
        %925 = vmatpush1.bf16.xpose.msra.mxu0 0
        %926 = vmatprep.subr.bf16.mxu0 0
        %927 = vmatpush1.bf16.xpose.msra.mxu0 0
        %928 = vmatprep.subr.bf16.mxu0 0
        %929 = vmatpush1.bf16.xpose.msra.mxu0 0
        %930 = vmatprep.subr.bf16.mxu0 0
        %931 = vmatpush1.bf16.xpose.msra.mxu0 0
        %932 = vmatprep.subr.bf16.mxu0 0
        %933 = vmatpush1.bf16.xpose.msra.mxu0 0
        %934 = vmatprep.subr.bf16.mxu0 0
        %935 = vmatpush1.bf16.xpose.msra.mxu0 0
        %936 = vmatprep.subr.bf16.mxu0 0
        %937 = vmatpush1.bf16.xpose.msra.mxu0 0
        %938 = vmatprep.subr.bf16.mxu0 0
        %939 = vmatpush1.bf16.xpose.msra.mxu0 0
        %940 = vmatprep.subr.bf16.mxu0 0
        %941 = vmatpush1.bf16.xpose.msra.mxu0 0
        %942 = vmatprep.subr.bf16.mxu0 0
        %943 = vmatpush1.bf16.xpose.msra.mxu0 0
        %944 = vmatprep.subr.bf16.mxu0 0
        %945 = vmatpush1.bf16.xpose.msra.mxu0 0
        %946 = vmatprep.subr.bf16.mxu0 0
        %947 = vmatpush1.bf16.xpose.msra.mxu0 0
        %948 = vmatprep.subr.bf16.mxu0 0
        %949 = vmatpush1.bf16.xpose.msra.mxu0 0
        %950 = vmatprep.subr.bf16.mxu0 0
        %951 = vmatpush1.bf16.xpose.msra.mxu0 0
        %952 = vmatprep.mubr.bf16.mxu0 0
        %953 = vmatmul.mubr.bf16.gmra.mrb[0].mxu0 %v915
        %v954 = vpop.f32.mrb[0].mxu0
        %v955 = vadd.f32 0.0, %v954
        %v956 = vpop.f32.mrb[0].mxu0
        %v957 = vpop.f32.mrb[0].mxu0
        %v958 = vpop.f32.mrb[0].mxu0
        %959 = vdwg.mxu0
        %v960 = vsel %vm766, %v808, -inf
        %961 = vmax.xlane.f32.xlu0 %v960
        %v962 = vpop.xlane.xlu0 %961
        %v963 = vsel %vm766, %v857, -inf
        %964 = vmax.xlane.f32.xlu0 %v963
        %v965 = vpop.xlane.xlu0 %964
        %v966 = vsel %vm766, %v906, -inf
        %967 = vmax.xlane.f32.xlu0 %v966
        %v968 = vpop.xlane.xlu0 %967
        %v969 = vsel %vm766, %v955, -inf
        %970 = vmax.xlane.f32.xlu0 %v969
        %v971 = vpop.xlane.xlu0 %970
        %v972 = vsub.f32 %v808, %v962
        %v973 = vsub.f32 %v857, %v965
        %v974 = vsub.f32 %v906, %v968
        %v975 = vsub.f32 %v955, %v971
        %v976 = vmul.f32 %v972, 1.442695
        %v977 = vpow.pop %v976
        %v978 = vmul.f32 %v973, 1.442695
        %v979 = vpow.pop %v978
        %v980 = vmul.f32 %v974, 1.442695
        %v981 = vpow.pop %v980
        %v982 = vmul.f32 %v975, 1.442695
        %v983 = vpow.pop %v982
        %v984 = vsel %vm766, %v977, 0.0
        %985 = vadd.xlane.f32.xlu0 %v984
        %v986 = vpop.xlane.xlu0 %985
        %v987 = vsel %vm766, %v979, 0.0
        %988 = vadd.xlane.f32.xlu0 %v987
        %v989 = vpop.xlane.xlu0 %988
        %v990 = vsel %vm766, %v981, 0.0
        %991 = vadd.xlane.f32.xlu0 %v990
        %v992 = vpop.xlane.xlu0 %991
        %v993 = vsel %vm766, %v983, 0.0
        %994 = vadd.xlane.f32.xlu0 %v993
        %v995 = vpop.xlane.xlu0 %994
        %v996 = vrcp.pop %v986
        %v997 = vrcp.pop %v989
        %v998 = vrcp.pop %v992
        %v999 = vrcp.pop %v995
        %v1000 = vmul.f32 %v977, %v996
        %v1001 = vmul.f32 %v979, %v997
        %v1002 = vmul.f32 %v981, %v998
        %v1003 = vmul.f32 %v983, %v999
        %v1004 = vpack.c.bf16 %v1000, %v1000
        %v1005 = vpack.c.bf16 %v1001, %v1001
        %v1006 = vpack.c.bf16 %v1002, %v1002
        %v1007 = vpack.c.bf16 %v1003, %v1003
        %v1008 = vpack.c.bf16 %v734, %v734
        %v1009 = vpack.c.bf16 %v751, %v751
        %v1010 = vpack.c.bf16 %v754, %v754
        %v1011 = vpack.c.bf16 %v757, %v757
        %v1013 = vsel %vm766, %v1004, 0
        %vm1015 = vcmask 1043456
        %v1017 = vsel %vm1015, %v1008, 0
        %1019 = vmatprep.subr.bf16.mxu0 0
        %1020 = vmatpush1.bf16.msra.mxu0 %v1017
        %1021 = vmatprep.subr.bf16.mxu0 0
        %1022 = vmatpush1.bf16.msra.mxu0 0
        %1023 = vmatprep.subr.bf16.mxu0 0
        %1024 = vmatpush1.bf16.msra.mxu0 0
        %1025 = vmatprep.subr.bf16.mxu0 0
        %1026 = vmatpush1.bf16.msra.mxu0 0
        %1027 = vmatprep.subr.bf16.mxu0 0
        %1028 = vmatpush1.bf16.msra.mxu0 0
        %1029 = vmatprep.subr.bf16.mxu0 0
        %1030 = vmatpush1.bf16.msra.mxu0 0
        %1031 = vmatprep.subr.bf16.mxu0 0
        %1032 = vmatpush1.bf16.msra.mxu0 0
        %1033 = vmatprep.subr.bf16.mxu0 0
        %1034 = vmatpush1.bf16.msra.mxu0 0
        %1035 = vmatprep.subr.bf16.mxu0 0
        %1036 = vmatpush1.bf16.msra.mxu0 0
        %1037 = vmatprep.subr.bf16.mxu0 0
        %1038 = vmatpush1.bf16.msra.mxu0 0
        %1039 = vmatprep.subr.bf16.mxu0 0
        %1040 = vmatpush1.bf16.msra.mxu0 0
        %1041 = vmatprep.subr.bf16.mxu0 0
        %1042 = vmatpush1.bf16.msra.mxu0 0
        %1043 = vmatprep.subr.bf16.mxu0 0
        %1044 = vmatpush1.bf16.msra.mxu0 0
        %1045 = vmatprep.subr.bf16.mxu0 0
        %1046 = vmatpush1.bf16.msra.mxu0 0
        %1047 = vmatprep.subr.bf16.mxu0 0
        %1048 = vmatpush1.bf16.msra.mxu0 0
        %1049 = vmatprep.subr.bf16.mxu0 0
        %1050 = vmatpush1.bf16.msra.mxu0 0
        %1051 = vmatprep.mubr.bf16.mxu0 0
        %1052 = vmatmul.mubr.bf16.gmra.mrb[0].mxu0 %v1013
        %v1053 = vpop.f32.mrb[0].mxu0
        %v1054 = vadd.f32 0.0, %v1053
        %v1055 = vpop.f32.mrb[0].mxu0
        %v1056 = vpop.f32.mrb[0].mxu0
        %v1057 = vpop.f32.mrb[0].mxu0
        %1058 = vdwg.mxu0
        %v1060 = vsel %vm766, %v1005, 0
        %v1063 = vsel %vm1015, %v1009, 0
        %1065 = vmatprep.subr.bf16.mxu0 0
        %1066 = vmatpush1.bf16.msra.mxu0 %v1063
        %1067 = vmatprep.subr.bf16.mxu0 0
        %1068 = vmatpush1.bf16.msra.mxu0 0
        %1069 = vmatprep.subr.bf16.mxu0 0
        %1070 = vmatpush1.bf16.msra.mxu0 0
        %1071 = vmatprep.subr.bf16.mxu0 0
        %1072 = vmatpush1.bf16.msra.mxu0 0
        %1073 = vmatprep.subr.bf16.mxu0 0
        %1074 = vmatpush1.bf16.msra.mxu0 0
        %1075 = vmatprep.subr.bf16.mxu0 0
        %1076 = vmatpush1.bf16.msra.mxu0 0
        %1077 = vmatprep.subr.bf16.mxu0 0
        %1078 = vmatpush1.bf16.msra.mxu0 0
        %1079 = vmatprep.subr.bf16.mxu0 0
        %1080 = vmatpush1.bf16.msra.mxu0 0
        %1081 = vmatprep.subr.bf16.mxu0 0
        %1082 = vmatpush1.bf16.msra.mxu0 0
        %1083 = vmatprep.subr.bf16.mxu0 0
        %1084 = vmatpush1.bf16.msra.mxu0 0
        %1085 = vmatprep.subr.bf16.mxu0 0
        %1086 = vmatpush1.bf16.msra.mxu0 0
        %1087 = vmatprep.subr.bf16.mxu0 0
        %1088 = vmatpush1.bf16.msra.mxu0 0
        %1089 = vmatprep.subr.bf16.mxu0 0
        %1090 = vmatpush1.bf16.msra.mxu0 0
        %1091 = vmatprep.subr.bf16.mxu0 0
        %1092 = vmatpush1.bf16.msra.mxu0 0
        %1093 = vmatprep.subr.bf16.mxu0 0
        %1094 = vmatpush1.bf16.msra.mxu0 0
        %1095 = vmatprep.subr.bf16.mxu0 0
        %1096 = vmatpush1.bf16.msra.mxu0 0
        %1097 = vmatprep.mubr.bf16.mxu0 0
        %1098 = vmatmul.mubr.bf16.gmra.mrb[0].mxu0 %v1060
        %v1099 = vpop.f32.mrb[0].mxu0
        %v1100 = vadd.f32 0.0, %v1099
        %v1101 = vpop.f32.mrb[0].mxu0
        %v1102 = vpop.f32.mrb[0].mxu0
        %v1103 = vpop.f32.mrb[0].mxu0
        %1104 = vdwg.mxu0
        %v1106 = vsel %vm766, %v1006, 0
        %v1109 = vsel %vm1015, %v1010, 0
        %1111 = vmatprep.subr.bf16.mxu0 0
        %1112 = vmatpush1.bf16.msra.mxu0 %v1109
        %1113 = vmatprep.subr.bf16.mxu0 0
        %1114 = vmatpush1.bf16.msra.mxu0 0
        %1115 = vmatprep.subr.bf16.mxu0 0
        %1116 = vmatpush1.bf16.msra.mxu0 0
        %1117 = vmatprep.subr.bf16.mxu0 0
        %1118 = vmatpush1.bf16.msra.mxu0 0
        %1119 = vmatprep.subr.bf16.mxu0 0
        %1120 = vmatpush1.bf16.msra.mxu0 0
        %1121 = vmatprep.subr.bf16.mxu0 0
        %1122 = vmatpush1.bf16.msra.mxu0 0
        %1123 = vmatprep.subr.bf16.mxu0 0
        %1124 = vmatpush1.bf16.msra.mxu0 0
        %1125 = vmatprep.subr.bf16.mxu0 0
        %1126 = vmatpush1.bf16.msra.mxu0 0
        %1127 = vmatprep.subr.bf16.mxu0 0
        %1128 = vmatpush1.bf16.msra.mxu0 0
        %1129 = vmatprep.subr.bf16.mxu0 0
        %1130 = vmatpush1.bf16.msra.mxu0 0
        %1131 = vmatprep.subr.bf16.mxu0 0
        %1132 = vmatpush1.bf16.msra.mxu0 0
        %1133 = vmatprep.subr.bf16.mxu0 0
        %1134 = vmatpush1.bf16.msra.mxu0 0
        %1135 = vmatprep.subr.bf16.mxu0 0
        %1136 = vmatpush1.bf16.msra.mxu0 0
        %1137 = vmatprep.subr.bf16.mxu0 0
        %1138 = vmatpush1.bf16.msra.mxu0 0
        %1139 = vmatprep.subr.bf16.mxu0 0
        %1140 = vmatpush1.bf16.msra.mxu0 0
        %1141 = vmatprep.subr.bf16.mxu0 0
        %1142 = vmatpush1.bf16.msra.mxu0 0
        %1143 = vmatprep.mubr.bf16.mxu0 0
        %1144 = vmatmul.mubr.bf16.gmra.mrb[0].mxu0 %v1106
        %v1145 = vpop.f32.mrb[0].mxu0
        %v1146 = vadd.f32 0.0, %v1145
        %v1147 = vpop.f32.mrb[0].mxu0
        %v1148 = vpop.f32.mrb[0].mxu0
        %v1149 = vpop.f32.mrb[0].mxu0
        %1150 = vdwg.mxu0
        %v1152 = vsel %vm766, %v1007, 0
        %v1155 = vsel %vm1015, %v1011, 0
        %1157 = vmatprep.subr.bf16.mxu0 0
        %1158 = vmatpush1.bf16.msra.mxu0 %v1155
        %1159 = vmatprep.subr.bf16.mxu0 0
        %1160 = vmatpush1.bf16.msra.mxu0 0
        %1161 = vmatprep.subr.bf16.mxu0 0
        %1162 = vmatpush1.bf16.msra.mxu0 0
        %1163 = vmatprep.subr.bf16.mxu0 0
        %1164 = vmatpush1.bf16.msra.mxu0 0
        %1165 = vmatprep.subr.bf16.mxu0 0
        %1166 = vmatpush1.bf16.msra.mxu0 0
        %1167 = vmatprep.subr.bf16.mxu0 0
        %1168 = vmatpush1.bf16.msra.mxu0 0
        %1169 = vmatprep.subr.bf16.mxu0 0
        %1170 = vmatpush1.bf16.msra.mxu0 0
        %1171 = vmatprep.subr.bf16.mxu0 0
        %1172 = vmatpush1.bf16.msra.mxu0 0
        %1173 = vmatprep.subr.bf16.mxu0 0
        %1174 = vmatpush1.bf16.msra.mxu0 0
        %1175 = vmatprep.subr.bf16.mxu0 0
        %1176 = vmatpush1.bf16.msra.mxu0 0
        %1177 = vmatprep.subr.bf16.mxu0 0
        %1178 = vmatpush1.bf16.msra.mxu0 0
        %1179 = vmatprep.subr.bf16.mxu0 0
        %1180 = vmatpush1.bf16.msra.mxu0 0
        %1181 = vmatprep.subr.bf16.mxu0 0
        %1182 = vmatpush1.bf16.msra.mxu0 0
        %1183 = vmatprep.subr.bf16.mxu0 0
        %1184 = vmatpush1.bf16.msra.mxu0 0
        %1185 = vmatprep.subr.bf16.mxu0 0
        %1186 = vmatpush1.bf16.msra.mxu0 0
        %1187 = vmatprep.subr.bf16.mxu0 0
        %1188 = vmatpush1.bf16.msra.mxu0 0
        %1189 = vmatprep.mubr.bf16.mxu0 0
        %1190 = vmatmul.mubr.bf16.gmra.mrb[0].mxu0 %v1152
        %v1191 = vpop.f32.mrb[0].mxu0
        %v1192 = vadd.f32 0.0, %v1191
        %v1193 = vpop.f32.mrb[0].mxu0
        %v1194 = vpop.f32.mrb[0].mxu0
        %v1195 = vpop.f32.mrb[0].mxu0
        %1196 = vdwg.mxu0
        %1198 = vrot.lane.b32.xlu0 %v1100, 8
        %v1199 = vpop.permute.xlu0 %1198
        %1202 = vrot.lane.b32.xlu0 %v1146, 16
        %v1203 = vpop.permute.xlu0 %1202
        %1206 = vrot.lane.b32.xlu0 %v1192, 24
        %v1207 = vpop.permute.xlu0 %1206
        %v1209 = vsel %vm766, %v1054, %v1199
        %vm1210 = vcmask 130048
        %v1211 = vsel %vm1210, %v1209, %v1203
        %vm1212 = vcmask 195584
        %v1213 = vsel %vm1212, %v1211, %v1207
        %v1214 = vpack.c.bf16 %v1213, %v1213
        %v1215 = vld [vmem:[#allocation5] sm:$0xf]
        %v1216 = vld [vmem:[#allocation5 + $0x4] sm:$0xf]
        %v1217 = vld [vmem:[#allocation5 + $0x8] sm:$0xf]
        %v1218 = vld [vmem:[#allocation5 + $0xc] sm:$0xf]
        %v1219 = vld [vmem:[#allocation7] sm:$0x1]
        %v1221 = vlaneseq
        %v1222 = vshrl.u32 %v1221, 7
        %v1223 = vsub.s32 0, %v1222
        %v1224 = vrot.slane %v1219, %v1223
        %v1230 = vunpack.c.l.b16 %v1215
        %v1231 = vunpack.c.l.b16 %v1216
        %v1232 = vunpack.c.l.b16 %v1217
        %v1233 = vunpack.c.l.b16 %v1218
        %v1234 = vpack.c.b16 %v1231, %v1230
        %v1235 = vpack.c.b16 %v1233, %v1232
        %v1239 = vsel %vm628, %v1214, 0
        %1241 = vmatprep.subr.bf16.mxu0 0
        %1242 = vmatpush1.bf16.msra.mxu0 %v1234
        %1243 = vmatprep.subr.bf16.mxu0 0
        %1244 = vmatpush1.bf16.msra.mxu0 %v1235
        %1245 = vmatprep.subr.bf16.mxu0 0
        %1246 = vmatpush1.bf16.msra.mxu0 0
        %1247 = vmatprep.subr.bf16.mxu0 0
        %1248 = vmatpush1.bf16.msra.mxu0 0
        %1249 = vmatprep.subr.bf16.mxu0 0
        %1250 = vmatpush1.bf16.msra.mxu0 0
        %1251 = vmatprep.subr.bf16.mxu0 0
        %1252 = vmatpush1.bf16.msra.mxu0 0
        %1253 = vmatprep.subr.bf16.mxu0 0
        %1254 = vmatpush1.bf16.msra.mxu0 0
        %1255 = vmatprep.subr.bf16.mxu0 0
        %1256 = vmatpush1.bf16.msra.mxu0 0
        %1257 = vmatprep.subr.bf16.mxu0 0
        %1258 = vmatpush1.bf16.msra.mxu0 0
        %1259 = vmatprep.subr.bf16.mxu0 0
        %1260 = vmatpush1.bf16.msra.mxu0 0
        %1261 = vmatprep.subr.bf16.mxu0 0
        %1262 = vmatpush1.bf16.msra.mxu0 0
        %1263 = vmatprep.subr.bf16.mxu0 0
        %1264 = vmatpush1.bf16.msra.mxu0 0
        %1265 = vmatprep.subr.bf16.mxu0 0
        %1266 = vmatpush1.bf16.msra.mxu0 0
        %1267 = vmatprep.subr.bf16.mxu0 0
        %1268 = vmatpush1.bf16.msra.mxu0 0
        %1269 = vmatprep.subr.bf16.mxu0 0
        %1270 = vmatpush1.bf16.msra.mxu0 0
        %1271 = vmatprep.subr.bf16.mxu0 0
        %1272 = vmatpush1.bf16.msra.mxu0 0
        %1273 = vmatprep.mubr.bf16.mxu0 0
        %1274 = vmatmul.mubr.bf16.gmra.mrb[0].mxu0 %v1239
        %v1275 = vpop.f32.mrb[0].mxu0
        %v1276 = vadd.f32 %v1224, %v1275
        %v1277 = vpop.f32.mrb[0].mxu0
        %v1278 = vpop.f32.mrb[0].mxu0
        %v1279 = vpop.f32.mrb[0].mxu0
        %1280 = vdwg.mxu0
        %v1281 = vadd.f32 %v603, %v1276
        %v1282 = vsel %vm628, %v1281, 0.0
        %1283 = vadd.xlane.f32.xlu0 %v1282
        %v1284 = vpop.xlane.xlu0 %1283
        %v1285 = vrcp.pop 32.0
        %v1286 = vmul.f32 %v1284, %v1285
        %v1287 = vsub.f32 %v1281, %v1286
        %v1288 = vmul.f32 %v1287, %v1287
        %v1289 = vsel %vm628, %v1288, 0.0
        %1290 = vadd.xlane.f32.xlu0 %v1289
        %v1291 = vpop.xlane.xlu0 %1290
        %v1292 = vmul.f32 %v1291, %v1285
        %v1293 = vadd.f32 %v1292, 1e-05
        %v1294 = vrsqrt.pop %v1293
        %v1295 = vmul.f32 %v1287, %v1294
        %v1296 = vld [vmem:[#allocation8] sm:$0x1]
        %v1298 = vlaneseq
        %v1299 = vshrl.u32 %v1298, 7
        %v1300 = vsub.s32 0, %v1299
        %v1301 = vrot.slane %v1296, %v1300
        %v1303 = vmul.f32 %v1295, %v1301
        %v1304 = vld [vmem:[#allocation10] sm:$0x1]
        %v1306 = vlaneseq
        %v1307 = vshrl.u32 %v1306, 7
        %v1308 = vsub.s32 0, %v1307
        %v1309 = vrot.slane %v1304, %v1308
        %v1311 = vadd.f32 %v1303, %v1309
        %v1312 = vpack.c.bf16 %v1311, %v1311
        %v1313 = vld [vmem:[%s10] sm:$0xf]
        %v1314 = vld [vmem:[%s10 + $0x4] sm:$0xf]
        %v1315 = vld [vmem:[%s10 + $0x8] sm:$0xf]
        %v1316 = vld [vmem:[%s10 + $0xc] sm:$0xf]
        %v1317 = vld [vmem:[%s11] sm:$0x1]
        %v1319 = vlaneseq
        %v1320 = vshrl.u32 %v1319, 7
        %v1321 = vsub.s32 0, %v1320
        %v1322 = vrot.slane %v1317, %v1321
        %v1328 = vunpack.c.l.b16 %v1313
        %v1329 = vunpack.c.l.b16 %v1314
        %v1330 = vunpack.c.l.b16 %v1315
        %v1331 = vunpack.c.l.b16 %v1316
        %v1332 = vpack.c.b16 %v1329, %v1328
        %v1333 = vpack.c.b16 %v1331, %v1330
        %v1337 = vsel %vm628, %v1312, 0
        %1339 = vmatprep.subr.bf16.mxu0 0
        %1340 = vmatpush1.bf16.msra.mxu0 %v1332
        %1341 = vmatprep.subr.bf16.mxu0 0
        %1342 = vmatpush1.bf16.msra.mxu0 %v1333
        %1343 = vmatprep.subr.bf16.mxu0 0
        %1344 = vmatpush1.bf16.msra.mxu0 0
        %1345 = vmatprep.subr.bf16.mxu0 0
        %1346 = vmatpush1.bf16.msra.mxu0 0
        %1347 = vmatprep.subr.bf16.mxu0 0
        %1348 = vmatpush1.bf16.msra.mxu0 0
        %1349 = vmatprep.subr.bf16.mxu0 0
        %1350 = vmatpush1.bf16.msra.mxu0 0
        %1351 = vmatprep.subr.bf16.mxu0 0
        %1352 = vmatpush1.bf16.msra.mxu0 0
        %1353 = vmatprep.subr.bf16.mxu0 0
        %1354 = vmatpush1.bf16.msra.mxu0 0
        %1355 = vmatprep.subr.bf16.mxu0 0
        %1356 = vmatpush1.bf16.msra.mxu0 0
        %1357 = vmatprep.subr.bf16.mxu0 0
        %1358 = vmatpush1.bf16.msra.mxu0 0
        %1359 = vmatprep.subr.bf16.mxu0 0
        %1360 = vmatpush1.bf16.msra.mxu0 0
        %1361 = vmatprep.subr.bf16.mxu0 0
        %1362 = vmatpush1.bf16.msra.mxu0 0
        %1363 = vmatprep.subr.bf16.mxu0 0
        %1364 = vmatpush1.bf16.msra.mxu0 0
        %1365 = vmatprep.subr.bf16.mxu0 0
        %1366 = vmatpush1.bf16.msra.mxu0 0
        %1367 = vmatprep.subr.bf16.mxu0 0
        %1368 = vmatpush1.bf16.msra.mxu0 0
        %1369 = vmatprep.subr.bf16.mxu0 0
        %1370 = vmatpush1.bf16.msra.mxu0 0
        %1371 = vmatprep.mubr.bf16.mxu0 0
        %1372 = vmatmul.mubr.bf16.gmra.mrb[0].mxu0 %v1337
        %v1373 = vpop.f32.mrb[0].mxu0
        %v1374 = vadd.f32 %v1322, %v1373
        %v1375 = vpop.f32.mrb[0].mxu0
        %v1376 = vpop.f32.mrb[0].mxu0
        %v1377 = vpop.f32.mrb[0].mxu0
        %1378 = vdwg.mxu0
        %v1379 = vmax.f32 %v1374, 0.0
        %v1380 = vpack.c.bf16 %v1379, %v1379
        %v1381 = vld [vmem:[%s12] sm:$0xf]
        %v1382 = vld [vmem:[%s12 + $0x4] sm:$0xf]
        %v1383 = vld [vmem:[%s12 + $0x8] sm:$0xf]
        %v1384 = vld [vmem:[%s12 + $0xc] sm:$0xf]
        %v1385 = vld [vmem:[%s12 + $0x10] sm:$0xf]
        %v1386 = vld [vmem:[%s12 + $0x14] sm:$0xf]
        %v1387 = vld [vmem:[%s12 + $0x18] sm:$0xf]
        %v1388 = vld [vmem:[%s12 + $0x1c] sm:$0xf]
        %v1389 = vld [vmem:[%s13] sm:$0x1]
        %v1391 = vlaneseq
        %v1392 = vshrl.u32 %v1391, 7
        %v1393 = vsub.s32 0, %v1392
        %v1394 = vrot.slane %v1389, %v1393
        %v1404 = vunpack.c.l.b16 %v1381
        %v1405 = vunpack.c.l.b16 %v1382
        %v1406 = vunpack.c.l.b16 %v1383
        %v1407 = vunpack.c.l.b16 %v1384
        %v1408 = vunpack.c.l.b16 %v1385
        %v1409 = vunpack.c.l.b16 %v1386
        %v1410 = vunpack.c.l.b16 %v1387
        %v1411 = vunpack.c.l.b16 %v1388
        %v1412 = vpack.c.b16 %v1405, %v1404
        %v1413 = vpack.c.b16 %v1407, %v1406
        %v1414 = vpack.c.b16 %v1409, %v1408
        %v1415 = vpack.c.b16 %v1411, %v1410
        %vm1420 = vcmask 523264
        %v1422 = vsel %vm1420, %v1380, 0
        %1424 = vmatprep.subr.bf16.mxu0 0
        %1425 = vmatpush1.bf16.msra.mxu0 %v1412
        %1426 = vmatprep.subr.bf16.mxu0 0
        %1427 = vmatpush1.bf16.msra.mxu0 %v1413
        %1428 = vmatprep.subr.bf16.mxu0 0
        %1429 = vmatpush1.bf16.msra.mxu0 %v1414
        %1430 = vmatprep.subr.bf16.mxu0 0
        %1431 = vmatpush1.bf16.msra.mxu0 %v1415
        %1432 = vmatprep.subr.bf16.mxu0 0
        %1433 = vmatpush1.bf16.msra.mxu0 0
        %1434 = vmatprep.subr.bf16.mxu0 0
        %1435 = vmatpush1.bf16.msra.mxu0 0
        %1436 = vmatprep.subr.bf16.mxu0 0
        %1437 = vmatpush1.bf16.msra.mxu0 0
        %1438 = vmatprep.subr.bf16.mxu0 0
        %1439 = vmatpush1.bf16.msra.mxu0 0
        %1440 = vmatprep.subr.bf16.mxu0 0
        %1441 = vmatpush1.bf16.msra.mxu0 0
        %1442 = vmatprep.subr.bf16.mxu0 0
        %1443 = vmatpush1.bf16.msra.mxu0 0
        %1444 = vmatprep.subr.bf16.mxu0 0
        %1445 = vmatpush1.bf16.msra.mxu0 0
        %1446 = vmatprep.subr.bf16.mxu0 0
        %1447 = vmatpush1.bf16.msra.mxu0 0
        %1448 = vmatprep.subr.bf16.mxu0 0
        %1449 = vmatpush1.bf16.msra.mxu0 0
        %1450 = vmatprep.subr.bf16.mxu0 0
        %1451 = vmatpush1.bf16.msra.mxu0 0
        %1452 = vmatprep.subr.bf16.mxu0 0
        %1453 = vmatpush1.bf16.msra.mxu0 0
        %1454 = vmatprep.subr.bf16.mxu0 0
        %1455 = vmatpush1.bf16.msra.mxu0 0
        %1456 = vmatprep.mubr.bf16.mxu0 0
        %1457 = vmatmul.mubr.bf16.gmra.mrb[0].mxu0 %v1422
        %v1458 = vpop.f32.mrb[0].mxu0
        %v1459 = vadd.f32 %v1394, %v1458
        %v1460 = vpop.f32.mrb[0].mxu0
        %v1461 = vpop.f32.mrb[0].mxu0
        %v1462 = vpop.f32.mrb[0].mxu0
        %1463 = vdwg.mxu0
        %v1464 = vadd.f32 %v1311, %v1459
        %v1465 = vsel %vm628, %v1464, 0.0
        %1466 = vadd.xlane.f32.xlu0 %v1465
        %v1467 = vpop.xlane.xlu0 %1466
        %v1468 = vmul.f32 %v1467, %v1285
        %v1469 = vsub.f32 %v1464, %v1468
        %v1470 = vmul.f32 %v1469, %v1469
        %v1471 = vsel %vm628, %v1470, 0.0
        %1472 = vadd.xlane.f32.xlu0 %v1471
        %v1473 = vpop.xlane.xlu0 %1472
        %v1474 = vmul.f32 %v1473, %v1285
        %v1475 = vadd.f32 %v1474, 1e-05
        %v1476 = vrsqrt.pop %v1475
        %v1477 = vmul.f32 %v1469, %v1476
        %v1478 = vld [vmem:[%s14] sm:$0x1]
        %v1480 = vlaneseq
        %v1481 = vshrl.u32 %v1480, 7
        %v1482 = vsub.s32 0, %v1481
        %v1483 = vrot.slane %v1478, %v1482
        %v1485 = vmul.f32 %v1477, %v1483
        %v1486 = vld [vmem:[%s15] sm:$0x1]
        %v1488 = vlaneseq
        %v1489 = vshrl.u32 %v1488, 7
        %v1490 = vsub.s32 0, %v1489
        %v1491 = vrot.slane %v1486, %v1490
        %v1493 = vadd.f32 %v1485, %v1491
        %1494 = vst.msk [vmem:[%s592] sm:$0xff] %vm628, %v1493
        %s1495 = sand.u32 %s387, 1
        %s1496 = scalar_lea.sflag [#allocation4], %s1495
        %s1497 = sand.u32 %s387, 1
        %s1498 = smul.addr %s1497, 8
        %s1499 = scalar_lea.vmem [#allocation11], %s1498
        // Predicated region
        $region105: #{tpu_custom_call.1} parent=83 // pred_check
          %p1500 = pneg %p397
        $region106: #{tpu_custom_call.1} parent=83 // pred_check_branch
          %1502 = sbr.rel (%p1500) target = $region108
        $region107: #{tpu_custom_call.1} parent=83 // pred_region
          %s1504 = ssub.s32 128, 128
          %1505 = vsyncadd %s1496, %s1504
          %s1506 = smul.addr %s33, 128
          %s1507 = scalar_lea.hbm %s16, %s1506
          %s1509 = sshll.u32 %s1499, 4
          %s1510 = int_to_ptr.vmem [resolvable:$true] %s1509
          %1512 = dma.vmem_to_hbm [thread:$0]  %s1510, 128, %s1507, %s1496
        $region108: #{tpu_custom_call.1} parent=83 // pred_fallthru
          _
      $region84: #{tpu_custom_call.1} parent=5 // pred_fallthru
        _
      %p1513 = scmp.le.s32.totalorder 2, %s28
      // Predicated region
      $region109: #{tpu_custom_call.1} parent=5 // pred_check
        %p1514 = pneg %p1513
      $region110: #{tpu_custom_call.1} parent=5 // pred_check_branch
        %1516 = sbr.rel (%p1514) target = $region112
      $region111: #{tpu_custom_call.1} parent=5 // pred_region
        %s1517 = ssub.s32 %s28, 2
        // Predicated region
        $region113: #{tpu_custom_call.1} parent=111 // pred_check
          %p1518 = pneg %p403
        $region114: #{tpu_custom_call.1} parent=111 // pred_check_branch
          %1520 = sbr.rel (%p1518) target = $region116
        $region115: #{tpu_custom_call.1} parent=111 // pred_region
          %s1521 = sand.u32 %s388, 1
          %s1522 = scalar_lea.sflag [#allocation4], %s1521
          %s1523 = sand.u32 %s388, 1
          %s1524 = smul.addr %s1523, 8
          %s1525 = scalar_lea.vmem [#allocation11], %s1524
          %1526 = dma.done %s1522, 128
        $region116: #{tpu_custom_call.1} parent=111 // pred_fallthru
          _
      $region112: #{tpu_custom_call.1} parent=5 // pred_fallthru
        _
    $region6: #{tpu_custom_call.1} parent=1 // loop_footer
      %s32 = sadd.s32 1, %s28
    $region7: #{tpu_custom_call.1} parent=1 // loop_footer_branch
      %27 = sbr.rel target = $region3
    $region8: #{tpu_custom_call.1} parent=1 // loop_exit
      _
    %1527 = vsyncpa [#allocation3], 1
    %s1528 = scalar_lea.sflag [#allocation3], 1
    %1529 = vsyncpa %s1528, 1
    %1530 = vsyncpa [#allocation6], 1
    %1531 = vsyncpa [#allocation9], 1
    %1532 = vsyncpa [#allocation4], 1
    %s1533 = scalar_lea.sflag [#allocation4], 1
    %1534 = vsyncpa %s1533, 1

</llo_original>
